<compile_context>
chip_gen: v7x
topology: tpu7x:2x2x1
jax: 0.10.0
libtpu: 0.0.40
codegen_flags: <defaults>
</compile_context>

<pallas_src>
import functools
import math

import jax
import jax.numpy as jnp
from jax.experimental import pallas as pl
from jax.experimental.pallas import tpu as pltpu


def _round_up(x, m):
    return ((x + m - 1) // m) * m


def _erf(x):
    # Abramowitz & Stegun 7.1.26 rational erf approximation (max abs err ~1.5e-7).
    # Only exp / mul / add / div / where -> guaranteed VPU/EUP lowering.
    p = 0.3275911
    a1, a2, a3, a4, a5 = (0.254829592, -0.284496736, 1.421413741,
                          -1.453152027, 1.061405429)
    ax = jnp.abs(x)
    t = 1.0 / (1.0 + p * ax)
    poly = ((((a5 * t + a4) * t + a3) * t + a2) * t + a1) * t
    y = 1.0 - poly * jnp.exp(-ax * ax)
    return jnp.where(x >= 0.0, y, -y)


def _gelu(x):
    return x * 0.5 * (1.0 + _erf(x * (1.0 / math.sqrt(2.0))))


def _layernorm(x, gamma, beta, eps=1e-12):
    # BertLayerNorm: biased variance over last dim, eps=1e-12.
    inv_h = 1.0 / x.shape[-1]
    u = jnp.sum(x, axis=-1, keepdims=True) * inv_h
    d = x - u
    var = jnp.sum(d * d, axis=-1, keepdims=True) * inv_h
    return gamma * (d * jax.lax.rsqrt(var + eps)) + beta


# --------------------------------------------------------------------------
# Kernel 1: self-attention + BertSelfOutput (dense -> residual -> LayerNorm)
# --------------------------------------------------------------------------
def _attention_kernel(x_ref, mask_ref, wqkv_ref, bqkv_ref, wo_ref, bo_ref,
                      g_ref, b_ref, o_ref, *, num_heads):
    x = x_ref[0]                                      # (S, H) f32
    S, H = x.shape
    dh = H // num_heads
    scale = 1.0 / math.sqrt(dh)

    # Fused QKV projection (single MXU dot against the resident packed weight).
    qkv = jnp.dot(x, wqkv_ref[...], preferred_element_type=jnp.float32) + bqkv_ref[...]
    mask = mask_ref[0]                                # (1, S) additive mask over keys

    ctx_heads = []
    for h in range(num_heads):                        # static unroll over heads
        q_h = qkv[:, h * dh:(h + 1) * dh]
        k_h = qkv[:, H + h * dh:H + (h + 1) * dh]
        v_h = qkv[:, 2 * H + h * dh:2 * H + (h + 1) * dh]
        s = jax.lax.dot_general(q_h, k_h, (((1,), (1,)), ((), ())),
                                preferred_element_type=jnp.float32)
        s = s * scale + mask                          # (S, S)
        s = s - jnp.max(s, axis=-1, keepdims=True)
        e = jnp.exp(s)
        p = e / jnp.sum(e, axis=-1, keepdims=True)
        # TODO(synk): attention-probs dropout not implemented (eval mode -> identity).
        ctx_heads.append(jnp.dot(p, v_h, preferred_element_type=jnp.float32))
    ctx = jnp.concatenate(ctx_heads, axis=-1)         # (S, H)

    # BertSelfOutput: dense -> dropout(identity) -> residual -> LayerNorm.
    y = jnp.dot(ctx, wo_ref[...], preferred_element_type=jnp.float32) + bo_ref[...]
    y = y + x
    o_ref[0] = _layernorm(y, g_ref[...], b_ref[...]).astype(o_ref.dtype)


def _attention_block(hidden_states, attention_mask, params, *, num_heads):
    B, S, H = hidden_states.shape
    assert H % num_heads == 0

    wqkv = jnp.concatenate([params["wq"], params["wk"], params["wv"]], axis=1)
    bqkv = jnp.concatenate([params["bq"], params["bk"], params["bv"]], axis=0)
    wqkv = wqkv.astype(jnp.float32)
    bqkv = bqkv.reshape(1, 3 * H).astype(jnp.float32)
    mask3 = attention_mask.reshape(B, 1, S).astype(jnp.float32)

    return pl.pallas_call(
        functools.partial(_attention_kernel, num_heads=num_heads),
        out_shape=jax.ShapeDtypeStruct((B, S, H), jnp.float32),
        grid_spec=pltpu.PrefetchScalarGridSpec(
            num_scalar_prefetch=0,
            grid=(B,),
            in_specs=[
                pl.BlockSpec((1, S, H), lambda b: (b, 0, 0)),     # hidden rows
                pl.BlockSpec((1, 1, S), lambda b: (b, 0, 0)),     # additive mask
                pl.BlockSpec((H, 3 * H), lambda b: (0, 0)),       # packed QKV weight
                pl.BlockSpec((1, 3 * H), lambda b: (0, 0)),       # packed QKV bias
                pl.BlockSpec((H, H), lambda b: (0, 0)),           # output proj weight
                pl.BlockSpec((1, H), lambda b: (0, 0)),           # output proj bias
                pl.BlockSpec((1, H), lambda b: (0, 0)),           # LN gamma
                pl.BlockSpec((1, H), lambda b: (0, 0)),           # LN beta
            ],
            out_specs=pl.BlockSpec((1, S, H), lambda b: (b, 0, 0)),
        ),
        compiler_params=pltpu.CompilerParams(
            dimension_semantics=("parallel",),
            vmem_limit_bytes=48 * 1024 * 1024,
        ),
    )(
        hidden_states.astype(jnp.float32), mask3, wqkv, bqkv,
        params["wo"].astype(jnp.float32),
        params["bo"].reshape(1, H).astype(jnp.float32),
        params["ln1_g"].reshape(1, H).astype(jnp.float32),
        params["ln1_b"].reshape(1, H).astype(jnp.float32),
    )


# --------------------------------------------------------------------------
# Kernel 2: BertIntermediate (dense + gelu) + BertOutput (dense + residual + LN)
# --------------------------------------------------------------------------
def _ffn_kernel(a_ref, w1_ref, b1_ref, w2_ref, b2_ref, res_ref, g_ref, b_ref, o_ref):
    # dense(H -> F), bf16 x bf16 -> f32 accumulate, then exact-erf GELU in f32.
    h = jnp.dot(a_ref[...], w1_ref[...], preferred_element_type=jnp.float32) + b1_ref[...]
    h = _gelu(h).astype(jnp.bfloat16)
    # dense(F -> H) + dropout(identity) + residual.
    # TODO(synk): training-mode dropout not implemented (eval mode -> identity).
    y = jnp.dot(h, w2_ref[...], preferred_element_type=jnp.float32) + b2_ref[...]
    y = y + res_ref[...]
    o_ref[...] = _layernorm(y, g_ref[...], b_ref[...]).astype(o_ref.dtype)


def _ffn_block(attn_out, params, *, tm=256):
    B, S, H = attn_out.shape
    F = params["wi"].shape[1]
    M = B * S

    a2 = attn_out.reshape(M, H)
    a_bf16 = a2.astype(jnp.bfloat16)                   # MXU operand
    res = a2.astype(jnp.float32)                       # residual stays f32
    w1 = params["wi"].astype(jnp.bfloat16)
    w2 = params["wo2"].astype(jnp.bfloat16)
    b1 = params["bi"].reshape(1, F).astype(jnp.float32)
    b2 = params["bo2"].reshape(1, H).astype(jnp.float32)
    g = params["ln2_g"].reshape(1, H).astype(jnp.float32)
    be = params["ln2_b"].reshape(1, H).astype(jnp.float32)

    tm = max(8, min(tm, _round_up(M, 8)))
    grid = (pl.cdiv(M, tm),)

    out = pl.pallas_call(
        _ffn_kernel,
        out_shape=jax.ShapeDtypeStruct((M, H), jnp.float32),
        grid_spec=pltpu.PrefetchScalarGridSpec(
            num_scalar_prefetch=0,
            grid=grid,
            in_specs=[
                pl.BlockSpec((tm, H), lambda i: (i, 0)),   # attention-output rows (bf16)
                pl.BlockSpec((H, F), lambda i: (0, 0)),    # resident W1 (bf16)
                pl.BlockSpec((1, F), lambda i: (0, 0)),    # b1
                pl.BlockSpec((F, H), lambda i: (0, 0)),    # resident W2 (bf16)
                pl.BlockSpec((1, H), lambda i: (0, 0)),    # b2
                pl.BlockSpec((tm, H), lambda i: (i, 0)),   # residual rows (f32)
                pl.BlockSpec((1, H), lambda i: (0, 0)),    # LN gamma
                pl.BlockSpec((1, H), lambda i: (0, 0)),    # LN beta
            ],
            out_specs=pl.BlockSpec((tm, H), lambda i: (i, 0)),
        ),
        compiler_params=pltpu.CompilerParams(
            dimension_semantics=("parallel",),
            vmem_limit_bytes=48 * 1024 * 1024,
        ),
    )(a_bf16, w1, b1, w2, b2, res, g, be)
    return out.reshape(B, S, H)


def bert_layer(hidden_states, attention_mask, params, *, num_heads, tm=256):
    """hidden_states: [B,S,H]; attention_mask: [B,S] additive (0 / -10000)."""
    attn_out = _attention_block(hidden_states, attention_mask, params, num_heads=num_heads)
    return _ffn_block(attn_out, params, tm=tm).astype(hidden_states.dtype)


if __name__ == "__main__":
    # Small shapes consistent with BertLayer (scaled-down BERT-base).
    B, S = 2, 8
    HIDDEN = 256            # config.hidden_size (scaled down from 768)
    INTERMEDIATE = 1024     # config.intermediate_size (scaled down from 3072)
    NUM_HEADS = 4           # head_dim = 64, matching BERT's per-head size

    key = jax.random.PRNGKey(0)
    ks = jax.random.split(key, 12)

    hidden_states = jax.random.normal(ks[0], (B, S, HIDDEN), dtype=jnp.float32)
    # Additive attention mask (0 = attend, -10000 = masked); mask the last 3 keys of batch 1.
    valid = jnp.ones((B, S), dtype=jnp.float32).at[1, S - 3:].set(0.0)
    attn_mask = (1.0 - valid) * -10000.0

    init = 0.02
    params = {
        "wq": init * jax.random.normal(ks[1], (HIDDEN, HIDDEN), jnp.float32),
        "wk": init * jax.random.normal(ks[2], (HIDDEN, HIDDEN), jnp.float32),
        "wv": init * jax.random.normal(ks[3], (HIDDEN, HIDDEN), jnp.float32),
        "wo": init * jax.random.normal(ks[4], (HIDDEN, HIDDEN), jnp.float32),
        "bq": init * jax.random.normal(ks[5], (HIDDEN,), jnp.float32),
        "bk": init * jax.random.normal(ks[6], (HIDDEN,), jnp.float32),
        "bv": init * jax.random.normal(ks[7], (HIDDEN,), jnp.float32),
        "bo": init * jax.random.normal(ks[8], (HIDDEN,), jnp.float32),
        "ln1_g": jnp.ones((HIDDEN,), jnp.float32),
        "ln1_b": jnp.zeros((HIDDEN,), jnp.float32),
        "wi": init * jax.random.normal(ks[9], (HIDDEN, INTERMEDIATE), jnp.float32),
        "bi": init * jax.random.normal(ks[10], (INTERMEDIATE,), jnp.float32),
        "wo2": init * jax.random.normal(ks[11], (INTERMEDIATE, HIDDEN), jnp.float32),
        "bo2": jnp.zeros((HIDDEN,), jnp.float32),
        "ln2_g": jnp.ones((HIDDEN,), jnp.float32),
        "ln2_b": jnp.zeros((HIDDEN,), jnp.float32),
    }

    out = bert_layer(hidden_states, attn_mask, params, num_heads=NUM_HEADS)
    out = jax.block_until_ready(out)

    # ---------------- pure-JAX reference (mirrors the kernel's bf16 FFN casts) ----------------
    hi = jax.lax.Precision.HIGHEST

    def ln_ref(x, g, b, eps=1e-12):
        u = jnp.mean(x, axis=-1, keepdims=True)
        s = jnp.mean((x - u) ** 2, axis=-1, keepdims=True)
        return g * ((x - u) / jnp.sqrt(s + eps)) + b

    dh = HIDDEN // NUM_HEADS
    x = hidden_states
    q = jnp.einsum("bsh,hk->bsk", x, params["wq"], precision=hi) + params["bq"]
    k = jnp.einsum("bsh,hk->bsk", x, params["wk"], precision=hi) + params["bk"]
    v = jnp.einsum("bsh,hk->bsk", x, params["wv"], precision=hi) + params["bv"]

    def split_heads(t):
        return t.reshape(B, S, NUM_HEADS, dh).transpose(0, 2, 1, 3)

    qh, kh, vh = split_heads(q), split_heads(k), split_heads(v)
    scores = jnp.einsum("bhqd,bhkd->bhqk", qh, kh, precision=hi) / math.sqrt(dh)
    scores = scores + attn_mask[:, None, None, :]
    probs = jax.nn.softmax(scores, axis=-1)
    ctx = jnp.einsum("bhqk,bhkd->bhqd", probs, vh, precision=hi)
    ctx = ctx.transpose(0, 2, 1, 3).reshape(B, S, HIDDEN)
    attn = jnp.einsum("bsh,hk->bsk", ctx, params["wo"], precision=hi) + params["bo"]
    a1 = ln_ref(attn + x, params["ln1_g"], params["ln1_b"])

    a1b = a1.astype(jnp.bfloat16).astype(jnp.float32)
    w1b = params["wi"].astype(jnp.bfloat16).astype(jnp.float32)
    w2b = params["wo2"].astype(jnp.bfloat16).astype(jnp.float32)
    h = jnp.einsum("bsh,hf->bsf", a1b, w1b, precision=hi) + params["bi"]
    h = h * 0.5 * (1.0 + jax.lax.erf(h / math.sqrt(2.0)))
    hb = h.astype(jnp.bfloat16).astype(jnp.float32)
    y = jnp.einsum("bsf,fh->bsh", hb, w2b, precision=hi) + params["bo2"] + a1
    ref = ln_ref(y, params["ln2_g"], params["ln2_b"])

    assert out.shape == (B, S, HIDDEN)
    max_err = float(jnp.max(jnp.abs(out - ref)))
    assert jnp.allclose(out, ref, atol=2e-2, rtol=2e-2), f"max abs err = {max_err}"

    print("KERNEL_OK")
</pallas_src>

<mosaic_0001>
module attributes {stable_mosaic.version = 11 : i64} {
  func.func @_attention_kernel(%arg0: i32, %arg1: memref<1x8x256xf32, #tpu.memory_space<vmem>>, %arg2: memref<1x1x8xf32, #tpu.memory_space<vmem>>, %arg3: memref<256x768xf32, #tpu.memory_space<vmem>>, %arg4: memref<1x768xf32, #tpu.memory_space<vmem>>, %arg5: memref<256x256xf32, #tpu.memory_space<vmem>>, %arg6: memref<1x256xf32, #tpu.memory_space<vmem>>, %arg7: memref<1x256xf32, #tpu.memory_space<vmem>>, %arg8: memref<1x256xf32, #tpu.memory_space<vmem>>, %arg9: memref<1x8x256xf32, #tpu.memory_space<vmem>>) attributes {dimension_semantics = [#tpu.dimension_semantics<parallel>], iteration_bounds = array<i64: 2>, scalar_prefetch = 0 : i64, scratch_operands = 0 : i64, tpu.core_type = #tpu.core_type<tc>, window_params = [{transform_indices = @transform_0, window_bounds = array<i64: 1, 8, 256>}, {transform_indices = @transform_1, window_bounds = array<i64: 1, 1, 8>}, {pipeline_mode = #tpu.pipeline_mode<synchronous>, transform_indices = @transform_2, window_bounds = array<i64: 256, 768>}, {pipeline_mode = #tpu.pipeline_mode<synchronous>, transform_indices = @transform_3, window_bounds = array<i64: 1, 768>}, {pipeline_mode = #tpu.pipeline_mode<synchronous>, transform_indices = @transform_4, window_bounds = array<i64: 256, 256>}, {pipeline_mode = #tpu.pipeline_mode<synchronous>, transform_indices = @transform_5, window_bounds = array<i64: 1, 256>}, {pipeline_mode = #tpu.pipeline_mode<synchronous>, transform_indices = @transform_6, window_bounds = array<i64: 1, 256>}, {pipeline_mode = #tpu.pipeline_mode<synchronous>, transform_indices = @transform_7, window_bounds = array<i64: 1, 256>}, {transform_indices = @transform_8, window_bounds = array<i64: 1, 8, 256>}]} {
    %c0 = arith.constant 0 : index
    %c0_0 = arith.constant 0 : index
    %c0_1 = arith.constant 0 : index
    %0 = vector.load %arg1[%c0, %c0_0, %c0_1] : memref<1x8x256xf32, #tpu.memory_space<vmem>>, vector<1x8x256xf32>
    %1 = vector.shape_cast %0 : vector<1x8x256xf32> to vector<8x256xf32>
    %c0_2 = arith.constant 0 : index
    %c0_3 = arith.constant 0 : index
    %2 = vector.load %arg3[%c0_2, %c0_3] : memref<256x768xf32, #tpu.memory_space<vmem>>, vector<256x768xf32>
    %cst = arith.constant dense<0.000000e+00> : vector<8x768xf32>
    %3 = tpu.matmul %1, %2, %cst {dimension_numbers = #tpu.dot_dimension_numbers<[1], [0], [0], [1], [0, 0, 1, 1], [], []>} : vector<8x256xf32>, vector<256x768xf32>, vector<8x768xf32> -> vector<8x768xf32>
    %c0_4 = arith.constant 0 : index
    %c0_5 = arith.constant 0 : index
    %4 = vector.load %arg4[%c0_4, %c0_5] : memref<1x768xf32, #tpu.memory_space<vmem>>, vector<1x768xf32>
    %5 = vector.broadcast %4 : vector<1x768xf32> to vector<8x768xf32>
    %6 = arith.addf %3, %5 : vector<8x768xf32>
    %c0_6 = arith.constant 0 : index
    %c0_7 = arith.constant 0 : index
    %c0_8 = arith.constant 0 : index
    %7 = vector.load %arg2[%c0_6, %c0_7, %c0_8] : memref<1x1x8xf32, #tpu.memory_space<vmem>>, vector<1x1x8xf32>
    %8 = vector.shape_cast %7 : vector<1x1x8xf32> to vector<1x8xf32>
    %9 = vector.extract_strided_slice %6 {offsets = [0, 0], sizes = [8, 64], strides = [1, 1]} : vector<8x768xf32> to vector<8x64xf32>
    %10 = vector.extract_strided_slice %6 {offsets = [0, 256], sizes = [8, 64], strides = [1, 1]} : vector<8x768xf32> to vector<8x64xf32>
    %11 = vector.extract_strided_slice %6 {offsets = [0, 512], sizes = [8, 64], strides = [1, 1]} : vector<8x768xf32> to vector<8x64xf32>
    %cst_9 = arith.constant dense<0.000000e+00> : vector<8x8xf32>
    %12 = tpu.matmul %9, %10, %cst_9 {dimension_numbers = #tpu.dot_dimension_numbers<[1], [1], [0], [0], [0, 0, 1, 0], [], []>} : vector<8x64xf32>, vector<8x64xf32>, vector<8x8xf32> -> vector<8x8xf32>
    %cst_10 = arith.constant 1.250000e-01 : f32
    %13 = vector.broadcast %cst_10 : f32 to vector<8x8xf32>
    %14 = arith.mulf %12, %13 : vector<8x8xf32>
    %15 = vector.broadcast %8 : vector<1x8xf32> to vector<8x8xf32>
    %16 = arith.addf %14, %15 : vector<8x8xf32>
    %cst_11 = arith.constant dense<0xFF800000> : vector<8xf32>
    %17 = vector.multi_reduction <maximumf>, %16, %cst_11 [1] : vector<8x8xf32> to vector<8xf32>
    %18 = vector.shape_cast %17 : vector<8xf32> to vector<8x1xf32>
    %19 = vector.broadcast %18 : vector<8x1xf32> to vector<8x8xf32>
    %20 = arith.subf %16, %19 : vector<8x8xf32>
    %21 = math.exp %20 : vector<8x8xf32>
    %cst_12 = arith.constant dense<0.000000e+00> : vector<8xf32>
    %22 = vector.multi_reduction <add>, %21, %cst_12 [1] : vector<8x8xf32> to vector<8xf32>
    %23 = vector.shape_cast %22 : vector<8xf32> to vector<8x1xf32>
    %24 = vector.broadcast %23 : vector<8x1xf32> to vector<8x8xf32>
    %25 = arith.divf %21, %24 : vector<8x8xf32>
    %cst_13 = arith.constant dense<0.000000e+00> : vector<8x64xf32>
    %26 = tpu.matmul %25, %11, %cst_13 {dimension_numbers = #tpu.dot_dimension_numbers<[1], [0], [0], [1], [0, 0, 1, 1], [], []>} : vector<8x8xf32>, vector<8x64xf32>, vector<8x64xf32> -> vector<8x64xf32>
    %27 = vector.extract_strided_slice %6 {offsets = [0, 64], sizes = [8, 64], strides = [1, 1]} : vector<8x768xf32> to vector<8x64xf32>
    %28 = vector.extract_strided_slice %6 {offsets = [0, 320], sizes = [8, 64], strides = [1, 1]} : vector<8x768xf32> to vector<8x64xf32>
    %29 = vector.extract_strided_slice %6 {offsets = [0, 576], sizes = [8, 64], strides = [1, 1]} : vector<8x768xf32> to vector<8x64xf32>
    %cst_14 = arith.constant dense<0.000000e+00> : vector<8x8xf32>
    %30 = tpu.matmul %27, %28, %cst_14 {dimension_numbers = #tpu.dot_dimension_numbers<[1], [1], [0], [0], [0, 0, 1, 0], [], []>} : vector<8x64xf32>, vector<8x64xf32>, vector<8x8xf32> -> vector<8x8xf32>
    %cst_15 = arith.constant 1.250000e-01 : f32
    %31 = vector.broadcast %cst_15 : f32 to vector<8x8xf32>
    %32 = arith.mulf %30, %31 : vector<8x8xf32>
    %33 = vector.broadcast %8 : vector<1x8xf32> to vector<8x8xf32>
    %34 = arith.addf %32, %33 : vector<8x8xf32>
    %cst_16 = arith.constant dense<0xFF800000> : vector<8xf32>
    %35 = vector.multi_reduction <maximumf>, %34, %cst_16 [1] : vector<8x8xf32> to vector<8xf32>
    %36 = vector.shape_cast %35 : vector<8xf32> to vector<8x1xf32>
    %37 = vector.broadcast %36 : vector<8x1xf32> to vector<8x8xf32>
    %38 = arith.subf %34, %37 : vector<8x8xf32>
    %39 = math.exp %38 : vector<8x8xf32>
    %cst_17 = arith.constant dense<0.000000e+00> : vector<8xf32>
    %40 = vector.multi_reduction <add>, %39, %cst_17 [1] : vector<8x8xf32> to vector<8xf32>
    %41 = vector.shape_cast %40 : vector<8xf32> to vector<8x1xf32>
    %42 = vector.broadcast %41 : vector<8x1xf32> to vector<8x8xf32>
    %43 = arith.divf %39, %42 : vector<8x8xf32>
    %cst_18 = arith.constant dense<0.000000e+00> : vector<8x64xf32>
    %44 = tpu.matmul %43, %29, %cst_18 {dimension_numbers = #tpu.dot_dimension_numbers<[1], [0], [0], [1], [0, 0, 1, 1], [], []>} : vector<8x8xf32>, vector<8x64xf32>, vector<8x64xf32> -> vector<8x64xf32>
    %45 = vector.extract_strided_slice %6 {offsets = [0, 128], sizes = [8, 64], strides = [1, 1]} : vector<8x768xf32> to vector<8x64xf32>
    %46 = vector.extract_strided_slice %6 {offsets = [0, 384], sizes = [8, 64], strides = [1, 1]} : vector<8x768xf32> to vector<8x64xf32>
    %47 = vector.extract_strided_slice %6 {offsets = [0, 640], sizes = [8, 64], strides = [1, 1]} : vector<8x768xf32> to vector<8x64xf32>
    %cst_19 = arith.constant dense<0.000000e+00> : vector<8x8xf32>
    %48 = tpu.matmul %45, %46, %cst_19 {dimension_numbers = #tpu.dot_dimension_numbers<[1], [1], [0], [0], [0, 0, 1, 0], [], []>} : vector<8x64xf32>, vector<8x64xf32>, vector<8x8xf32> -> vector<8x8xf32>
    %cst_20 = arith.constant 1.250000e-01 : f32
    %49 = vector.broadcast %cst_20 : f32 to vector<8x8xf32>
    %50 = arith.mulf %48, %49 : vector<8x8xf32>
    %51 = vector.broadcast %8 : vector<1x8xf32> to vector<8x8xf32>
    %52 = arith.addf %50, %51 : vector<8x8xf32>
    %cst_21 = arith.constant dense<0xFF800000> : vector<8xf32>
    %53 = vector.multi_reduction <maximumf>, %52, %cst_21 [1] : vector<8x8xf32> to vector<8xf32>
    %54 = vector.shape_cast %53 : vector<8xf32> to vector<8x1xf32>
    %55 = vector.broadcast %54 : vector<8x1xf32> to vector<8x8xf32>
    %56 = arith.subf %52, %55 : vector<8x8xf32>
    %57 = math.exp %56 : vector<8x8xf32>
    %cst_22 = arith.constant dense<0.000000e+00> : vector<8xf32>
    %58 = vector.multi_reduction <add>, %57, %cst_22 [1] : vector<8x8xf32> to vector<8xf32>
    %59 = vector.shape_cast %58 : vector<8xf32> to vector<8x1xf32>
    %60 = vector.broadcast %59 : vector<8x1xf32> to vector<8x8xf32>
    %61 = arith.divf %57, %60 : vector<8x8xf32>
    %cst_23 = arith.constant dense<0.000000e+00> : vector<8x64xf32>
    %62 = tpu.matmul %61, %47, %cst_23 {dimension_numbers = #tpu.dot_dimension_numbers<[1], [0], [0], [1], [0, 0, 1, 1], [], []>} : vector<8x8xf32>, vector<8x64xf32>, vector<8x64xf32> -> vector<8x64xf32>
    %63 = vector.extract_strided_slice %6 {offsets = [0, 192], sizes = [8, 64], strides = [1, 1]} : vector<8x768xf32> to vector<8x64xf32>
    %64 = vector.extract_strided_slice %6 {offsets = [0, 448], sizes = [8, 64], strides = [1, 1]} : vector<8x768xf32> to vector<8x64xf32>
    %65 = vector.extract_strided_slice %6 {offsets = [0, 704], sizes = [8, 64], strides = [1, 1]} : vector<8x768xf32> to vector<8x64xf32>
    %cst_24 = arith.constant dense<0.000000e+00> : vector<8x8xf32>
    %66 = tpu.matmul %63, %64, %cst_24 {dimension_numbers = #tpu.dot_dimension_numbers<[1], [1], [0], [0], [0, 0, 1, 0], [], []>} : vector<8x64xf32>, vector<8x64xf32>, vector<8x8xf32> -> vector<8x8xf32>
    %cst_25 = arith.constant 1.250000e-01 : f32
    %67 = vector.broadcast %cst_25 : f32 to vector<8x8xf32>
    %68 = arith.mulf %66, %67 : vector<8x8xf32>
    %69 = vector.broadcast %8 : vector<1x8xf32> to vector<8x8xf32>
    %70 = arith.addf %68, %69 : vector<8x8xf32>
    %cst_26 = arith.constant dense<0xFF800000> : vector<8xf32>
    %71 = vector.multi_reduction <maximumf>, %70, %cst_26 [1] : vector<8x8xf32> to vector<8xf32>
    %72 = vector.shape_cast %71 : vector<8xf32> to vector<8x1xf32>
    %73 = vector.broadcast %72 : vector<8x1xf32> to vector<8x8xf32>
    %74 = arith.subf %70, %73 : vector<8x8xf32>
    %75 = math.exp %74 : vector<8x8xf32>
    %cst_27 = arith.constant dense<0.000000e+00> : vector<8xf32>
    %76 = vector.multi_reduction <add>, %75, %cst_27 [1] : vector<8x8xf32> to vector<8xf32>
    %77 = vector.shape_cast %76 : vector<8xf32> to vector<8x1xf32>
    %78 = vector.broadcast %77 : vector<8x1xf32> to vector<8x8xf32>
    %79 = arith.divf %75, %78 : vector<8x8xf32>
    %cst_28 = arith.constant dense<0.000000e+00> : vector<8x64xf32>
    %80 = tpu.matmul %79, %65, %cst_28 {dimension_numbers = #tpu.dot_dimension_numbers<[1], [0], [0], [1], [0, 0, 1, 1], [], []>} : vector<8x8xf32>, vector<8x64xf32>, vector<8x64xf32> -> vector<8x64xf32>
    %81 = tpu.concatenate %26, %44, %62, %80 in 1 : vector<8x64xf32>, vector<8x64xf32>, vector<8x64xf32>, vector<8x64xf32> -> vector<8x256xf32>
    %c0_29 = arith.constant 0 : index
    %c0_30 = arith.constant 0 : index
    %82 = vector.load %arg5[%c0_29, %c0_30] : memref<256x256xf32, #tpu.memory_space<vmem>>, vector<256x256xf32>
    %cst_31 = arith.constant dense<0.000000e+00> : vector<8x256xf32>
    %83 = tpu.matmul %81, %82, %cst_31 {dimension_numbers = #tpu.dot_dimension_numbers<[1], [0], [0], [1], [0, 0, 1, 1], [], []>} : vector<8x256xf32>, vector<256x256xf32>, vector<8x256xf32> -> vector<8x256xf32>
    %c0_32 = arith.constant 0 : index
    %c0_33 = arith.constant 0 : index
    %84 = vector.load %arg6[%c0_32, %c0_33] : memref<1x256xf32, #tpu.memory_space<vmem>>, vector<1x256xf32>
    %85 = vector.broadcast %84 : vector<1x256xf32> to vector<8x256xf32>
    %86 = arith.addf %83, %85 : vector<8x256xf32>
    %87 = arith.addf %86, %1 : vector<8x256xf32>
    %c0_34 = arith.constant 0 : index
    %c0_35 = arith.constant 0 : index
    %88 = vector.load %arg7[%c0_34, %c0_35] : memref<1x256xf32, #tpu.memory_space<vmem>>, vector<1x256xf32>
    %c0_36 = arith.constant 0 : index
    %c0_37 = arith.constant 0 : index
    %89 = vector.load %arg8[%c0_36, %c0_37] : memref<1x256xf32, #tpu.memory_space<vmem>>, vector<1x256xf32>
    %cst_38 = arith.constant dense<0.000000e+00> : vector<8xf32>
    %90 = vector.multi_reduction <add>, %87, %cst_38 [1] : vector<8x256xf32> to vector<8xf32>
    %91 = vector.shape_cast %90 : vector<8xf32> to vector<8x1xf32>
    %cst_39 = arith.constant 3.906250e-03 : f32
    %92 = vector.broadcast %cst_39 : f32 to vector<8x1xf32>
    %93 = arith.mulf %91, %92 : vector<8x1xf32>
    %94 = vector.broadcast %93 : vector<8x1xf32> to vector<8x256xf32>
    %95 = arith.subf %87, %94 : vector<8x256xf32>
    %96 = arith.mulf %95, %95 : vector<8x256xf32>
    %cst_40 = arith.constant dense<0.000000e+00> : vector<8xf32>
    %97 = vector.multi_reduction <add>, %96, %cst_40 [1] : vector<8x256xf32> to vector<8xf32>
    %98 = vector.shape_cast %97 : vector<8xf32> to vector<8x1xf32>
    %cst_41 = arith.constant 3.906250e-03 : f32
    %99 = vector.broadcast %cst_41 : f32 to vector<8x1xf32>
    %100 = arith.mulf %98, %99 : vector<8x1xf32>
    %cst_42 = arith.constant 9.99999996E-13 : f32
    %101 = vector.broadcast %cst_42 : f32 to vector<8x1xf32>
    %102 = arith.addf %100, %101 : vector<8x1xf32>
    %103 = math.rsqrt %102 : vector<8x1xf32>
    %104 = vector.broadcast %103 : vector<8x1xf32> to vector<8x256xf32>
    %105 = arith.mulf %95, %104 : vector<8x256xf32>
    %106 = vector.broadcast %88 : vector<1x256xf32> to vector<8x256xf32>
    %107 = arith.mulf %106, %105 : vector<8x256xf32>
    %108 = vector.broadcast %89 : vector<1x256xf32> to vector<8x256xf32>
    %109 = arith.addf %107, %108 : vector<8x256xf32>
    %c0_43 = arith.constant 0 : index
    %c0_44 = arith.constant 0 : index
    %c0_45 = arith.constant 0 : index
    %110 = vector.load %arg9[%c0_43, %c0_44, %c0_45] : memref<1x8x256xf32, #tpu.memory_space<vmem>>, vector<1x8x256xf32>
    %111 = vector.shape_cast %110 : vector<1x8x256xf32> to vector<8x256xf32>
    %112 = vector.shape_cast %109 : vector<8x256xf32> to vector<1x8x256xf32>
    tpu.vector_store %arg9[%c0_43, %c0_44, %c0_45], %112 {strides = array<i32>} : memref<1x8x256xf32, #tpu.memory_space<vmem>>, vector<1x8x256xf32>,
    return
  }
  func.func @transform_0(%arg0: i32) -> (i32, i32, i32) {
    %c0_i32 = arith.constant 0 : i32
    %c0_i32_0 = arith.constant 0 : i32
    %c0_i32_1 = arith.constant 0 : i32
    return %arg0, %c0_i32, %c0_i32_0 : i32, i32, i32
  }
  func.func @transform_1(%arg0: i32) -> (i32, i32, i32) {
    %c0_i32 = arith.constant 0 : i32
    %c0_i32_0 = arith.constant 0 : i32
    %c0_i32_1 = arith.constant 0 : i32
    return %arg0, %c0_i32, %c0_i32_0 : i32, i32, i32
  }
  func.func @transform_2(%arg0: i32) -> (i32, i32) {
    %c0_i32 = arith.constant 0 : i32
    %c0_i32_0 = arith.constant 0 : i32
    %c0_i32_1 = arith.constant 0 : i32
    return %c0_i32, %c0_i32_0 : i32, i32
  }
  func.func @transform_3(%arg0: i32) -> (i32, i32) {
    %c0_i32 = arith.constant 0 : i32
    %c0_i32_0 = arith.constant 0 : i32
    %c0_i32_1 = arith.constant 0 : i32
    return %c0_i32, %c0_i32_0 : i32, i32
  }
  func.func @transform_4(%arg0: i32) -> (i32, i32) {
    %c0_i32 = arith.constant 0 : i32
    %c0_i32_0 = arith.constant 0 : i32
    %c0_i32_1 = arith.constant 0 : i32
    return %c0_i32, %c0_i32_0 : i32, i32
  }
  func.func @transform_5(%arg0: i32) -> (i32, i32) {
    %c0_i32 = arith.constant 0 : i32
    %c0_i32_0 = arith.constant 0 : i32
    %c0_i32_1 = arith.constant 0 : i32
    return %c0_i32, %c0_i32_0 : i32, i32
  }
  func.func @transform_6(%arg0: i32) -> (i32, i32) {
    %c0_i32 = arith.constant 0 : i32
    %c0_i32_0 = arith.constant 0 : i32
    %c0_i32_1 = arith.constant 0 : i32
    return %c0_i32, %c0_i32_0 : i32, i32
  }
  func.func @transform_7(%arg0: i32) -> (i32, i32) {
    %c0_i32 = arith.constant 0 : i32
    %c0_i32_0 = arith.constant 0 : i32
    %c0_i32_1 = arith.constant 0 : i32
    return %c0_i32, %c0_i32_0 : i32, i32
  }
  func.func @transform_8(%arg0: i32) -> (i32, i32, i32) {
    %c0_i32 = arith.constant 0 : i32
    %c0_i32_0 = arith.constant 0 : i32
    %c0_i32_1 = arith.constant 0 : i32
    return %arg0, %c0_i32, %c0_i32_0 : i32, i32, i32
  }
}

</mosaic_0001>

<llo_original>
// kernel: tpu_custom_call.1
$region0: #{tpu_custom_call.1}
  #allocation0 [shape = 'u32[]', space=smem, size = 0x4, offset = 0x4, fixed_abs, tag = 'smem constant byte address 0x4 - core index']
  #allocation1 [shape = 'u32[144,128]{1,0:T(1,128)}', space=vmem, size = 0x12000, scoped, tag = 'internal scratch']
  %s0 = inlined_call_operand.hbm [shape: f32[2,8,256], index: 0, kind: input, shape index: {}]
  %s1 = inlined_call_operand.vmem [shape: f32[2,1,8], index: 1, kind: input, shape index: {}]
  %s2 = inlined_call_operand.hbm [shape: f32[256,768], index: 2, kind: input, shape index: {}]
  %s3 = inlined_call_operand.vmem [shape: f32[1,768], index: 3, kind: input, shape index: {}]
  %s4 = inlined_call_operand.hbm [shape: f32[256,256], index: 4, kind: input, shape index: {}]
  %s5 = inlined_call_operand.vmem [shape: f32[1,256], index: 5, kind: input, shape index: {}]
  %s6 = inlined_call_operand.vmem [shape: f32[1,256], index: 6, kind: input, shape index: {}]
  %s7 = inlined_call_operand.vmem [shape: f32[1,256], index: 7, kind: input, shape index: {}]
  %s8 = inlined_call_operand.hbm [shape: f32[2,8,256], index: 8, kind: output, shape index: {}]
  %s9 = sld [smem:[#allocation0]]
  $region77: #{tpu_custom_call.1} parent=0
    _
  %s11 = ssub.s32 1, %s9
  %s12 = scalar_select 0, %s11, %s9
  $region1: #{tpu_custom_call.1} parent=0
    #allocation2 [shape = 'u8[16384]{0}', space=vmem, size = 0x4000, scoped, tag = 'input window, operand 0']
    #allocation3 [shape = 's32[2]{0}', space=sflag, size = 0x8, scoped, tag = 'scoped memory for tpu_custom_call.1']
    #allocation4 [shape = 's32[2]{0}', space=sflag, size = 0x8, scoped, tag = 'scoped memory for tpu_custom_call.1']
    #allocation5 [shape = 'u8[786432]{0}', space=vmem, size = 0xc0000, scoped, tag = 'input window, operand 2, single buffered']
    #allocation6 [shape = 's32[1]{0}', space=sflag, size = 0x4, scoped, tag = 'scoped memory for tpu_custom_call.1']
    #allocation7 [shape = 'u8[262144]{0}', space=vmem, size = 0x40000, scoped, tag = 'input window, operand 4, single buffered']
    #allocation8 [shape = 'u8[16384]{0}', space=vmem, size = 0x4000, scoped, tag = 'output window, operand 0']
    %13 = vsyncpa [#allocation3], 0
    %s14 = scalar_lea.sflag [#allocation3], 1
    %15 = vsyncpa %s14, 0
    %16 = vsyncpa [#allocation6], 0
    %17 = vsyncpa [#allocation4], 0
    %s18 = scalar_lea.sflag [#allocation4], 1
    %19 = vsyncpa %s18, 0
    loop: start=0, step=1, limit=4
    $region2: #{tpu_custom_call.1} parent=1 // loop_pre_header
      _
    $region3: #{tpu_custom_call.1} parent=1 // loop_header
      %s21 = sphi 0, %s25
      %p22 = scmp.ge.s32.totalorder %s21, 4
      %s31 = sphi 0, %s33
      %s34 = sphi 0, %s31
      %s35 = sphi 0, %s34
      %s51 = sphi 0, %s35
      %s57 = sphi 0, %s59
      %s60 = sphi 0, %s57
      %s61 = sphi 0, %s60
      %s77 = sphi 0, %s61
      %s81 = sphi 0, %s81
      %s83 = sphi 0, %s81
      %s84 = sphi 0, %s83
      %s98 = sphi 0, %s84
      %s102 = sphi 0, %s102
      %s104 = sphi 0, %s102
      %s105 = sphi 0, %s104
      %s119 = sphi 0, %s105
      %s123 = sphi 0, %s123
      %s125 = sphi 0, %s123
      %s126 = sphi 0, %s125
      %s140 = sphi 0, %s126
      %s144 = sphi 0, %s144
      %s146 = sphi 0, %s144
      %s147 = sphi 0, %s146
      %s161 = sphi 0, %s147
      %s165 = sphi 0, %s165
      %s167 = sphi 0, %s165
      %s168 = sphi 0, %s167
      %s182 = sphi 0, %s168
      %s186 = sphi 0, %s186
      %s188 = sphi 0, %s186
      %s189 = sphi 0, %s188
      %s203 = sphi 0, %s189
      %s209 = sphi 0, %s211
      %s212 = sphi 0, %s209
      %s213 = sphi 0, %s212
      %s229 = sphi 0, %s213
    $region4: #{tpu_custom_call.1} parent=1 // loop_header_branch
      %24 = sbr.rel (%p22) target = $region8
    $region5: #{tpu_custom_call.1} parent=1 // loop_body
      %s26 = ssub.s32 %s21, 1
      %s27 = ssub.s32 %s21, 2
      %s28 = sadd.s32 %s21, 1
      %s29 = ssub.s32 %s21, %s28
      %p30 = scmp.eq.s32.totalorder %s29, 0
      %s32 = sadd.s32 %s31, 1
      %s33 = scalar_select %p30, %s31, %s32
      %p36 = pneg %p30
      %p37 = scmp.eq.s32.totalorder %s21, 1
      %p38 = por %p36, %p37
      %p39 = scmp.ne.s32.totalorder %s31, %s34
      %p40 = scmp.eq.s32.totalorder %s21, 0
      %p41 = por %p39, %p40
      %p42 = scmp.ne.s32.totalorder %s31, %s34
      %p43 = scmp.eq.s32.totalorder %s26, 1
      %p44 = por %p42, %p43
      %p45 = scmp.ne.s32.totalorder %s34, %s35
      %p46 = scmp.eq.s32.totalorder %s26, 0
      %p47 = por %p45, %p46
      %p48 = scmp.ne.s32.totalorder %s34, %s35
      %p49 = scmp.eq.s32.totalorder %s27, 1
      %p50 = por %p48, %p49
      %p52 = scmp.ne.s32.totalorder %s35, %s51
      %p53 = scmp.eq.s32.totalorder %s27, 0
      %p54 = por %p52, %p53
      %s55 = ssub.s32 %s21, %s28
      %p56 = scmp.eq.s32.totalorder %s55, 0
      %s58 = sadd.s32 %s57, 1
      %s59 = scalar_select %p56, %s57, %s58
      %p62 = pneg %p56
      %p63 = scmp.eq.s32.totalorder %s21, 1
      %p64 = por %p62, %p63
      %p65 = scmp.ne.s32.totalorder %s57, %s60
      %p66 = scmp.eq.s32.totalorder %s21, 0
      %p67 = por %p65, %p66
      %p68 = scmp.ne.s32.totalorder %s57, %s60
      %p69 = scmp.eq.s32.totalorder %s26, 1
      %p70 = por %p68, %p69
      %p71 = scmp.ne.s32.totalorder %s60, %s61
      %p72 = scmp.eq.s32.totalorder %s26, 0
      %p73 = por %p71, %p72
      %p74 = scmp.ne.s32.totalorder %s60, %s61
      %p75 = scmp.eq.s32.totalorder %s27, 1
      %p76 = por %p74, %p75
      %p78 = scmp.ne.s32.totalorder %s61, %s77
      %p79 = scmp.eq.s32.totalorder %s27, 0
      %p80 = por %p78, %p79
      %s82 = sadd.s32 %s81, 1
      %p85 = scmp.eq.s32.totalorder %s21, 1
      %p86 = scmp.ne.s32.totalorder %s81, %s83
      %p87 = scmp.eq.s32.totalorder %s21, 0
      %p88 = por %p86, %p87
      %p89 = scmp.ne.s32.totalorder %s81, %s83
      %p90 = scmp.eq.s32.totalorder %s26, 1
      %p91 = por %p89, %p90
      %p92 = scmp.ne.s32.totalorder %s83, %s84
      %p93 = scmp.eq.s32.totalorder %s26, 0
      %p94 = por %p92, %p93
      %p95 = scmp.ne.s32.totalorder %s83, %s84
      %p96 = scmp.eq.s32.totalorder %s27, 1
      %p97 = por %p95, %p96
      %p99 = scmp.ne.s32.totalorder %s84, %s98
      %p100 = scmp.eq.s32.totalorder %s27, 0
      %p101 = por %p99, %p100
      %s103 = sadd.s32 %s102, 1
      %p106 = scmp.eq.s32.totalorder %s21, 1
      %p107 = scmp.ne.s32.totalorder %s102, %s104
      %p108 = scmp.eq.s32.totalorder %s21, 0
      %p109 = por %p107, %p108
      %p110 = scmp.ne.s32.totalorder %s102, %s104
      %p111 = scmp.eq.s32.totalorder %s26, 1
      %p112 = por %p110, %p111
      %p113 = scmp.ne.s32.totalorder %s104, %s105
      %p114 = scmp.eq.s32.totalorder %s26, 0
      %p115 = por %p113, %p114
      %p116 = scmp.ne.s32.totalorder %s104, %s105
      %p117 = scmp.eq.s32.totalorder %s27, 1
      %p118 = por %p116, %p117
      %p120 = scmp.ne.s32.totalorder %s105, %s119
      %p121 = scmp.eq.s32.totalorder %s27, 0
      %p122 = por %p120, %p121
      %s124 = sadd.s32 %s123, 1
      %p127 = scmp.eq.s32.totalorder %s21, 1
      %p128 = scmp.ne.s32.totalorder %s123, %s125
      %p129 = scmp.eq.s32.totalorder %s21, 0
      %p130 = por %p128, %p129
      %p131 = scmp.ne.s32.totalorder %s123, %s125
      %p132 = scmp.eq.s32.totalorder %s26, 1
      %p133 = por %p131, %p132
      %p134 = scmp.ne.s32.totalorder %s125, %s126
      %p135 = scmp.eq.s32.totalorder %s26, 0
      %p136 = por %p134, %p135
      %p137 = scmp.ne.s32.totalorder %s125, %s126
      %p138 = scmp.eq.s32.totalorder %s27, 1
      %p139 = por %p137, %p138
      %p141 = scmp.ne.s32.totalorder %s126, %s140
      %p142 = scmp.eq.s32.totalorder %s27, 0
      %p143 = por %p141, %p142
      %s145 = sadd.s32 %s144, 1
      %p148 = scmp.eq.s32.totalorder %s21, 1
      %p149 = scmp.ne.s32.totalorder %s144, %s146
      %p150 = scmp.eq.s32.totalorder %s21, 0
      %p151 = por %p149, %p150
      %p152 = scmp.ne.s32.totalorder %s144, %s146
      %p153 = scmp.eq.s32.totalorder %s26, 1
      %p154 = por %p152, %p153
      %p155 = scmp.ne.s32.totalorder %s146, %s147
      %p156 = scmp.eq.s32.totalorder %s26, 0
      %p157 = por %p155, %p156
      %p158 = scmp.ne.s32.totalorder %s146, %s147
      %p159 = scmp.eq.s32.totalorder %s27, 1
      %p160 = por %p158, %p159
      %p162 = scmp.ne.s32.totalorder %s147, %s161
      %p163 = scmp.eq.s32.totalorder %s27, 0
      %p164 = por %p162, %p163
      %s166 = sadd.s32 %s165, 1
      %p169 = scmp.eq.s32.totalorder %s21, 1
      %p170 = scmp.ne.s32.totalorder %s165, %s167
      %p171 = scmp.eq.s32.totalorder %s21, 0
      %p172 = por %p170, %p171
      %p173 = scmp.ne.s32.totalorder %s165, %s167
      %p174 = scmp.eq.s32.totalorder %s26, 1
      %p175 = por %p173, %p174
      %p176 = scmp.ne.s32.totalorder %s167, %s168
      %p177 = scmp.eq.s32.totalorder %s26, 0
      %p178 = por %p176, %p177
      %p179 = scmp.ne.s32.totalorder %s167, %s168
      %p180 = scmp.eq.s32.totalorder %s27, 1
      %p181 = por %p179, %p180
      %p183 = scmp.ne.s32.totalorder %s168, %s182
      %p184 = scmp.eq.s32.totalorder %s27, 0
      %p185 = por %p183, %p184
      %s187 = sadd.s32 %s186, 1
      %p190 = scmp.eq.s32.totalorder %s21, 1
      %p191 = scmp.ne.s32.totalorder %s186, %s188
      %p192 = scmp.eq.s32.totalorder %s21, 0
      %p193 = por %p191, %p192
      %p194 = scmp.ne.s32.totalorder %s186, %s188
      %p195 = scmp.eq.s32.totalorder %s26, 1
      %p196 = por %p194, %p195
      %p197 = scmp.ne.s32.totalorder %s188, %s189
      %p198 = scmp.eq.s32.totalorder %s26, 0
      %p199 = por %p197, %p198
      %p200 = scmp.ne.s32.totalorder %s188, %s189
      %p201 = scmp.eq.s32.totalorder %s27, 1
      %p202 = por %p200, %p201
      %p204 = scmp.ne.s32.totalorder %s189, %s203
      %p205 = scmp.eq.s32.totalorder %s27, 0
      %p206 = por %p204, %p205
      %s207 = ssub.s32 %s21, %s28
      %p208 = scmp.eq.s32.totalorder %s207, 0
      %s210 = sadd.s32 %s209, 1
      %s211 = scalar_select %p208, %s209, %s210
      %p214 = pneg %p208
      %p215 = scmp.eq.s32.totalorder %s21, 1
      %p216 = por %p214, %p215
      %p217 = scmp.ne.s32.totalorder %s209, %s212
      %p218 = scmp.eq.s32.totalorder %s21, 0
      %p219 = por %p217, %p218
      %p220 = scmp.ne.s32.totalorder %s209, %s212
      %p221 = scmp.eq.s32.totalorder %s26, 1
      %p222 = por %p220, %p221
      %p223 = scmp.ne.s32.totalorder %s212, %s213
      %p224 = scmp.eq.s32.totalorder %s26, 0
      %p225 = por %p223, %p224
      %p226 = scmp.ne.s32.totalorder %s212, %s213
      %p227 = scmp.eq.s32.totalorder %s27, 1
      %p228 = por %p226, %p227
      %p230 = scmp.ne.s32.totalorder %s213, %s229
      %p231 = scmp.eq.s32.totalorder %s27, 0
      %p232 = por %p230, %p231
      %p233 = scmp.le.s32.totalorder 1, %s21
      %p234 = scmp.lt.s32.totalorder %s21, 3
      %p235 = pnand %p233, %p234
      %p236 = pneg %p235
      // Predicated region
      $region9: #{tpu_custom_call.1} parent=5 // pred_check
        _
      $region10: #{tpu_custom_call.1} parent=5 // pred_check_branch
        %238 = sbr.rel (%p235) target = $region12
      $region11: #{tpu_custom_call.1} parent=5 // pred_region
        %s239 = ssub.s32 %s21, 1
        // Predicated region
        $region13: #{tpu_custom_call.1} parent=11 // pred_check
          %p240 = pneg %p94
        $region14: #{tpu_custom_call.1} parent=11 // pred_check_branch
          %242 = sbr.rel (%p240) target = $region16
        $region15: #{tpu_custom_call.1} parent=11 // pred_region
          %s244 = ssub.s32 24576, 24576
          %245 = vsyncadd [#allocation6], %s244
          %s246 = sshll.u32 [#allocation5], 4
          %s247 = int_to_ptr.vmem [resolvable:$true] %s246
          %252 = dma.hbm_to_vmem [thread:$0]  %s2, 24576, %s247, [#allocation6], 768, 768, 48
        $region16: #{tpu_custom_call.1} parent=11 // pred_fallthru
          _
        // Predicated region
        $region17: #{tpu_custom_call.1} parent=11 // pred_check
          %p253 = pneg %p115
        $region18: #{tpu_custom_call.1} parent=11 // pred_check_branch
          %255 = sbr.rel (%p253) target = $region20
        $region19: #{tpu_custom_call.1} parent=11 // pred_region
          _
        $region20: #{tpu_custom_call.1} parent=11 // pred_fallthru
          _
        // Predicated region
        $region21: #{tpu_custom_call.1} parent=11 // pred_check
          %p256 = pneg %p136
        $region22: #{tpu_custom_call.1} parent=11 // pred_check_branch
          %258 = sbr.rel (%p256) target = $region24
        $region23: #{tpu_custom_call.1} parent=11 // pred_region
          %s260 = ssub.s32 8192, 8192
          %261 = vsyncadd [#allocation6], %s260
          %s262 = sshll.u32 [#allocation7], 4
          %s263 = int_to_ptr.vmem [resolvable:$true] %s262
          %268 = dma.hbm_to_vmem [thread:$0]  %s4, 8192, %s263, [#allocation6], 256, 256, 16
        $region24: #{tpu_custom_call.1} parent=11 // pred_fallthru
          _
        // Predicated region
        $region25: #{tpu_custom_call.1} parent=11 // pred_check
          %p269 = pneg %p157
        $region26: #{tpu_custom_call.1} parent=11 // pred_check_branch
          %271 = sbr.rel (%p269) target = $region28
        $region27: #{tpu_custom_call.1} parent=11 // pred_region
          _
        $region28: #{tpu_custom_call.1} parent=11 // pred_fallthru
          _
        // Predicated region
        $region29: #{tpu_custom_call.1} parent=11 // pred_check
          %p272 = pneg %p178
        $region30: #{tpu_custom_call.1} parent=11 // pred_check_branch
          %274 = sbr.rel (%p272) target = $region32
        $region31: #{tpu_custom_call.1} parent=11 // pred_region
          _
        $region32: #{tpu_custom_call.1} parent=11 // pred_fallthru
          _
        // Predicated region
        $region33: #{tpu_custom_call.1} parent=11 // pred_check
          %p275 = pneg %p199
        $region34: #{tpu_custom_call.1} parent=11 // pred_check_branch
          %277 = sbr.rel (%p275) target = $region36
        $region35: #{tpu_custom_call.1} parent=11 // pred_region
          _
        $region36: #{tpu_custom_call.1} parent=11 // pred_fallthru
          _
      $region12: #{tpu_custom_call.1} parent=5 // pred_fallthru
        _
      %p278 = scmp.lt.s32.totalorder %s21, 2
      // Predicated region
      $region37: #{tpu_custom_call.1} parent=5 // pred_check
        %p279 = pneg %p278
      $region38: #{tpu_custom_call.1} parent=5 // pred_check_branch
        %281 = sbr.rel (%p279) target = $region40
      $region39: #{tpu_custom_call.1} parent=5 // pred_region
        // Predicated region
        $region41: #{tpu_custom_call.1} parent=39 // pred_check
          %p282 = pneg %p41
        $region42: #{tpu_custom_call.1} parent=39 // pred_check_branch
          %284 = sbr.rel (%p282) target = $region44
        $region43: #{tpu_custom_call.1} parent=39 // pred_region
          %s285 = sand.u32 %s31, 1
          %s286 = scalar_lea.sflag [#allocation3], %s285
          %s287 = sand.u32 %s31, 1
          %s288 = smul.addr %s287, 16
          %s289 = scalar_lea.vmem [#allocation2], %s288
          %s291 = ssub.s32 256, 256
          %292 = vsyncadd %s286, %s291
          %s293 = smul.addr %s21, 2
          %s294 = smul.addr %s293, 128
          %s295 = scalar_lea.hbm %s0, %s294
          %s297 = sshll.u32 %s289, 4
          %s298 = int_to_ptr.vmem [resolvable:$true] %s297
          %300 = dma.hbm_to_vmem [thread:$0]  %s295, 256, %s298, %s286
        $region44: #{tpu_custom_call.1} parent=39 // pred_fallthru
          _
        // Predicated region
        $region45: #{tpu_custom_call.1} parent=39 // pred_check
          %p301 = pneg %p67
        $region46: #{tpu_custom_call.1} parent=39 // pred_check_branch
          %303 = sbr.rel (%p301) target = $region48
        $region47: #{tpu_custom_call.1} parent=39 // pred_region
          %p304 = scmp.lt.s32.totalorder %s21, 1
          %s305 = scalar_select %p304, %s21, 1
          %s306 = scalar_lea.vmem %s1, %s305
        $region48: #{tpu_custom_call.1} parent=39 // pred_fallthru
          _
      $region40: #{tpu_custom_call.1} parent=5 // pred_fallthru
        _
      %p307 = scmp.le.s32.totalorder 1, %s21
      %p308 = scmp.lt.s32.totalorder %s21, 3
      %p309 = pnand %p307, %p308
      %p310 = pneg %p309
      // Predicated region
      $region49: #{tpu_custom_call.1} parent=5 // pred_check
        _
      $region50: #{tpu_custom_call.1} parent=5 // pred_check_branch
        %312 = sbr.rel (%p309) target = $region52
      $region51: #{tpu_custom_call.1} parent=5 // pred_region
        %s313 = ssub.s32 %s21, 1
        %s314 = sand.u32 %s34, 1
        %s315 = scalar_lea.sflag [#allocation3], %s314
        %s316 = sand.u32 %s34, 1
        %s317 = smul.addr %s316, 16
        %s318 = scalar_lea.vmem [#allocation2], %s317
        // Predicated region
        $region53: #{tpu_custom_call.1} parent=51 // pred_check
          %p319 = pneg %p47
        $region54: #{tpu_custom_call.1} parent=51 // pred_check_branch
          %321 = sbr.rel (%p319) target = $region56
        $region55: #{tpu_custom_call.1} parent=51 // pred_region
          %322 = dma.done %s315, 256
        $region56: #{tpu_custom_call.1} parent=51 // pred_fallthru
          _
        // Predicated region
        $region57: #{tpu_custom_call.1} parent=51 // pred_check
          %p323 = pneg %p94
        $region58: #{tpu_custom_call.1} parent=51 // pred_check_branch
          %325 = sbr.rel (%p323) target = $region60
        $region59: #{tpu_custom_call.1} parent=51 // pred_region
          %326 = dma.done [#allocation6], 24576
        $region60: #{tpu_custom_call.1} parent=51 // pred_fallthru
          _
        // Predicated region
        $region61: #{tpu_custom_call.1} parent=51 // pred_check
          %p327 = pneg %p136
        $region62: #{tpu_custom_call.1} parent=51 // pred_check_branch
          %329 = sbr.rel (%p327) target = $region64
        $region63: #{tpu_custom_call.1} parent=51 // pred_region
          %330 = dma.done [#allocation6], 8192
        $region64: #{tpu_custom_call.1} parent=51 // pred_fallthru
          _
        %s331 = sand.u32 %s34, 1
        %s332 = scalar_lea.sflag [#allocation3], %s331
        %s333 = sand.u32 %s34, 1
        %s334 = smul.addr %s333, 16
        %s335 = scalar_lea.vmem [#allocation2], %s334
        %p336 = pneg %p47
        %p337 = pneg %p44
        %p338 = scmp.lt.s32.totalorder %s26, 1
        %s339 = scalar_select %p338, %s26, 1
        %s340 = scalar_lea.vmem %s1, %s339
        %p341 = pneg %p73
        %p342 = pneg %p70
        %p343 = pneg %p94
        %p344 = pneg %p91
        %p345 = pneg %p115
        %p346 = pneg %p112
        %p347 = pneg %p136
        %p348 = pneg %p133
        %p349 = pneg %p157
        %p350 = pneg %p154
        %p351 = pneg %p178
        %p352 = pneg %p175
        %p353 = pneg %p199
        %p354 = pneg %p196
        %p355 = pneg %p225
        %p356 = pneg %p222
        %s357 = sand.u32 %s212, 1
        %s358 = scalar_lea.sflag [#allocation4], %s357
        %s359 = sand.u32 %s212, 1
        %s360 = smul.addr %s359, 16
        %s361 = scalar_lea.vmem [#allocation8], %s360
        %p362 = scmp.lt.s32.totalorder %s26, 1
        %s363 = scalar_select %p362, %s26, 1
        %s364 = scalar_lea.vmem %s1, %s363
        %v365 = vld [vmem:[%s318] sm:$0xff]
        %v366 = vld [vmem:[%s318 + $0x8] sm:$0xff]
        %v367 = vld [vmem:[#allocation5] sm:$0xff]
        %v368 = vld [vmem:[#allocation5 + $0x8] sm:$0xff]
        %v369 = vld [vmem:[#allocation5 + $0x10] sm:$0xff]
        %v370 = vld [vmem:[#allocation5 + $0x18] sm:$0xff]
        %v371 = vld [vmem:[#allocation5 + $0x20] sm:$0xff]
        %v372 = vld [vmem:[#allocation5 + $0x28] sm:$0xff]
        %v373 = vld [vmem:[#allocation5 + $0x30] sm:$0xff]
        %v374 = vld [vmem:[#allocation5 + $0x38] sm:$0xff]
        %v375 = vld [vmem:[#allocation5 + $0x40] sm:$0xff]
        %v376 = vld [vmem:[#allocation5 + $0x48] sm:$0xff]
        %v377 = vld [vmem:[#allocation5 + $0x50] sm:$0xff]
        %v378 = vld [vmem:[#allocation5 + $0x58] sm:$0xff]
        %v379 = vld [vmem:[#allocation5 + $0x60] sm:$0xff]
        %v380 = vld [vmem:[#allocation5 + $0x68] sm:$0xff]
        %v381 = vld [vmem:[#allocation5 + $0x70] sm:$0xff]
        %v382 = vld [vmem:[#allocation5 + $0x78] sm:$0xff]
        %v383 = vld [vmem:[#allocation5 + $0x80] sm:$0xff]
        %v384 = vld [vmem:[#allocation5 + $0x88] sm:$0xff]
        %v385 = vld [vmem:[#allocation5 + $0x90] sm:$0xff]
        %v386 = vld [vmem:[#allocation5 + $0x98] sm:$0xff]
        %v387 = vld [vmem:[#allocation5 + $0xa0] sm:$0xff]
        %v388 = vld [vmem:[#allocation5 + $0xa8] sm:$0xff]
        %v389 = vld [vmem:[#allocation5 + $0xb0] sm:$0xff]
        %v390 = vld [vmem:[#allocation5 + $0xb8] sm:$0xff]
        %v391 = vld [vmem:[#allocation5 + $0xc0] sm:$0xff]
        %v392 = vld [vmem:[#allocation5 + $0xc8] sm:$0xff]
        %v393 = vld [vmem:[#allocation5 + $0xd0] sm:$0xff]
        %v394 = vld [vmem:[#allocation5 + $0xd8] sm:$0xff]
        %v395 = vld [vmem:[#allocation5 + $0xe0] sm:$0xff]
        %v396 = vld [vmem:[#allocation5 + $0xe8] sm:$0xff]
        %v397 = vld [vmem:[#allocation5 + $0xf0] sm:$0xff]
        %v398 = vld [vmem:[#allocation5 + $0xf8] sm:$0xff]
        %v399 = vld [vmem:[#allocation5 + $0x100] sm:$0xff]
        %v400 = vld [vmem:[#allocation5 + $0x108] sm:$0xff]
        %v401 = vld [vmem:[#allocation5 + $0x110] sm:$0xff]
        %v402 = vld [vmem:[#allocation5 + $0x118] sm:$0xff]
        %v403 = vld [vmem:[#allocation5 + $0x120] sm:$0xff]
        %v404 = vld [vmem:[#allocation5 + $0x128] sm:$0xff]
        %v405 = vld [vmem:[#allocation5 + $0x130] sm:$0xff]
        %v406 = vld [vmem:[#allocation5 + $0x138] sm:$0xff]
        %v407 = vld [vmem:[#allocation5 + $0x140] sm:$0xff]
        %v408 = vld [vmem:[#allocation5 + $0x148] sm:$0xff]
        %v409 = vld [vmem:[#allocation5 + $0x150] sm:$0xff]
        %v410 = vld [vmem:[#allocation5 + $0x158] sm:$0xff]
        %v411 = vld [vmem:[#allocation5 + $0x160] sm:$0xff]
        %v412 = vld [vmem:[#allocation5 + $0x168] sm:$0xff]
        %v413 = vld [vmem:[#allocation5 + $0x170] sm:$0xff]
        %v414 = vld [vmem:[#allocation5 + $0x178] sm:$0xff]
        %v415 = vld [vmem:[#allocation5 + $0x180] sm:$0xff]
        %v416 = vld [vmem:[#allocation5 + $0x188] sm:$0xff]
        %v417 = vld [vmem:[#allocation5 + $0x190] sm:$0xff]
        %v418 = vld [vmem:[#allocation5 + $0x198] sm:$0xff]
        %v419 = vld [vmem:[#allocation5 + $0x1a0] sm:$0xff]
        %v420 = vld [vmem:[#allocation5 + $0x1a8] sm:$0xff]
        %v421 = vld [vmem:[#allocation5 + $0x1b0] sm:$0xff]
        %v422 = vld [vmem:[#allocation5 + $0x1b8] sm:$0xff]
        %v423 = vld [vmem:[#allocation5 + $0x1c0] sm:$0xff]
        %v424 = vld [vmem:[#allocation5 + $0x1c8] sm:$0xff]
        %v425 = vld [vmem:[#allocation5 + $0x1d0] sm:$0xff]
        %v426 = vld [vmem:[#allocation5 + $0x1d8] sm:$0xff]
        %v427 = vld [vmem:[#allocation5 + $0x1e0] sm:$0xff]
        %v428 = vld [vmem:[#allocation5 + $0x1e8] sm:$0xff]
        %v429 = vld [vmem:[#allocation5 + $0x1f0] sm:$0xff]
        %v430 = vld [vmem:[#allocation5 + $0x1f8] sm:$0xff]
        %v431 = vld [vmem:[#allocation5 + $0x200] sm:$0xff]
        %v432 = vld [vmem:[#allocation5 + $0x208] sm:$0xff]
        %v433 = vld [vmem:[#allocation5 + $0x210] sm:$0xff]
        %v434 = vld [vmem:[#allocation5 + $0x218] sm:$0xff]
        %v435 = vld [vmem:[#allocation5 + $0x220] sm:$0xff]
        %v436 = vld [vmem:[#allocation5 + $0x228] sm:$0xff]
        %v437 = vld [vmem:[#allocation5 + $0x230] sm:$0xff]
        %v438 = vld [vmem:[#allocation5 + $0x238] sm:$0xff]
        %v439 = vld [vmem:[#allocation5 + $0x240] sm:$0xff]
        %v440 = vld [vmem:[#allocation5 + $0x248] sm:$0xff]
        %v441 = vld [vmem:[#allocation5 + $0x250] sm:$0xff]
        %v442 = vld [vmem:[#allocation5 + $0x258] sm:$0xff]
        %v443 = vld [vmem:[#allocation5 + $0x260] sm:$0xff]
        %v444 = vld [vmem:[#allocation5 + $0x268] sm:$0xff]
        %v445 = vld [vmem:[#allocation5 + $0x270] sm:$0xff]
        %v446 = vld [vmem:[#allocation5 + $0x278] sm:$0xff]
        %v447 = vld [vmem:[#allocation5 + $0x280] sm:$0xff]
        %v448 = vld [vmem:[#allocation5 + $0x288] sm:$0xff]
        %v449 = vld [vmem:[#allocation5 + $0x290] sm:$0xff]
        %v450 = vld [vmem:[#allocation5 + $0x298] sm:$0xff]
        %v451 = vld [vmem:[#allocation5 + $0x2a0] sm:$0xff]
        %v452 = vld [vmem:[#allocation5 + $0x2a8] sm:$0xff]
        %v453 = vld [vmem:[#allocation5 + $0x2b0] sm:$0xff]
        %v454 = vld [vmem:[#allocation5 + $0x2b8] sm:$0xff]
        %v455 = vld [vmem:[#allocation5 + $0x2c0] sm:$0xff]
        %v456 = vld [vmem:[#allocation5 + $0x2c8] sm:$0xff]
        %v457 = vld [vmem:[#allocation5 + $0x2d0] sm:$0xff]
        %v458 = vld [vmem:[#allocation5 + $0x2d8] sm:$0xff]
        %v459 = vld [vmem:[#allocation5 + $0x2e0] sm:$0xff]
        %v460 = vld [vmem:[#allocation5 + $0x2e8] sm:$0xff]
        %v461 = vld [vmem:[#allocation5 + $0x2f0] sm:$0xff]
        %v462 = vld [vmem:[#allocation5 + $0x2f8] sm:$0xff]
        %v463 = vld [vmem:[#allocation5 + $0x300] sm:$0xff]
        %v464 = vld [vmem:[#allocation5 + $0x308] sm:$0xff]
        %v465 = vld [vmem:[#allocation5 + $0x310] sm:$0xff]
        %v466 = vld [vmem:[#allocation5 + $0x318] sm:$0xff]
        %v467 = vld [vmem:[#allocation5 + $0x320] sm:$0xff]
        %v468 = vld [vmem:[#allocation5 + $0x328] sm:$0xff]
        %v469 = vld [vmem:[#allocation5 + $0x330] sm:$0xff]
        %v470 = vld [vmem:[#allocation5 + $0x338] sm:$0xff]
        %v471 = vld [vmem:[#allocation5 + $0x340] sm:$0xff]
        %v472 = vld [vmem:[#allocation5 + $0x348] sm:$0xff]
        %v473 = vld [vmem:[#allocation5 + $0x350] sm:$0xff]
        %v474 = vld [vmem:[#allocation5 + $0x358] sm:$0xff]
        %v475 = vld [vmem:[#allocation5 + $0x360] sm:$0xff]
        %v476 = vld [vmem:[#allocation5 + $0x368] sm:$0xff]
        %v477 = vld [vmem:[#allocation5 + $0x370] sm:$0xff]
        %v478 = vld [vmem:[#allocation5 + $0x378] sm:$0xff]
        %v479 = vld [vmem:[#allocation5 + $0x380] sm:$0xff]
        %v480 = vld [vmem:[#allocation5 + $0x388] sm:$0xff]
        %v481 = vld [vmem:[#allocation5 + $0x390] sm:$0xff]
        %v482 = vld [vmem:[#allocation5 + $0x398] sm:$0xff]
        %v483 = vld [vmem:[#allocation5 + $0x3a0] sm:$0xff]
        %v484 = vld [vmem:[#allocation5 + $0x3a8] sm:$0xff]
        %v485 = vld [vmem:[#allocation5 + $0x3b0] sm:$0xff]
        %v486 = vld [vmem:[#allocation5 + $0x3b8] sm:$0xff]
        %v487 = vld [vmem:[#allocation5 + $0x3c0] sm:$0xff]
        %v488 = vld [vmem:[#allocation5 + $0x3c8] sm:$0xff]
        %v489 = vld [vmem:[#allocation5 + $0x3d0] sm:$0xff]
        %v490 = vld [vmem:[#allocation5 + $0x3d8] sm:$0xff]
        %v491 = vld [vmem:[#allocation5 + $0x3e0] sm:$0xff]
        %v492 = vld [vmem:[#allocation5 + $0x3e8] sm:$0xff]
        %v493 = vld [vmem:[#allocation5 + $0x3f0] sm:$0xff]
        %v494 = vld [vmem:[#allocation5 + $0x3f8] sm:$0xff]
        %v495 = vld [vmem:[#allocation5 + $0x400] sm:$0xff]
        %v496 = vld [vmem:[#allocation5 + $0x408] sm:$0xff]
        %v497 = vld [vmem:[#allocation5 + $0x410] sm:$0xff]
        %v498 = vld [vmem:[#allocation5 + $0x418] sm:$0xff]
        %v499 = vld [vmem:[#allocation5 + $0x420] sm:$0xff]
        %v500 = vld [vmem:[#allocation5 + $0x428] sm:$0xff]
        %v501 = vld [vmem:[#allocation5 + $0x430] sm:$0xff]
        %v502 = vld [vmem:[#allocation5 + $0x438] sm:$0xff]
        %v503 = vld [vmem:[#allocation5 + $0x440] sm:$0xff]
        %v504 = vld [vmem:[#allocation5 + $0x448] sm:$0xff]
        %v505 = vld [vmem:[#allocation5 + $0x450] sm:$0xff]
        %v506 = vld [vmem:[#allocation5 + $0x458] sm:$0xff]
        %v507 = vld [vmem:[#allocation5 + $0x460] sm:$0xff]
        %v508 = vld [vmem:[#allocation5 + $0x468] sm:$0xff]
        %v509 = vld [vmem:[#allocation5 + $0x470] sm:$0xff]
        %v510 = vld [vmem:[#allocation5 + $0x478] sm:$0xff]
        %v511 = vld [vmem:[#allocation5 + $0x480] sm:$0xff]
        %v512 = vld [vmem:[#allocation5 + $0x488] sm:$0xff]
        %v513 = vld [vmem:[#allocation5 + $0x490] sm:$0xff]
        %v514 = vld [vmem:[#allocation5 + $0x498] sm:$0xff]
        %v515 = vld [vmem:[#allocation5 + $0x4a0] sm:$0xff]
        %v516 = vld [vmem:[#allocation5 + $0x4a8] sm:$0xff]
        %v517 = vld [vmem:[#allocation5 + $0x4b0] sm:$0xff]
        %v518 = vld [vmem:[#allocation5 + $0x4b8] sm:$0xff]
        %v519 = vld [vmem:[#allocation5 + $0x4c0] sm:$0xff]
        %v520 = vld [vmem:[#allocation5 + $0x4c8] sm:$0xff]
        %v521 = vld [vmem:[#allocation5 + $0x4d0] sm:$0xff]
        %v522 = vld [vmem:[#allocation5 + $0x4d8] sm:$0xff]
        %v523 = vld [vmem:[#allocation5 + $0x4e0] sm:$0xff]
        %v524 = vld [vmem:[#allocation5 + $0x4e8] sm:$0xff]
        %v525 = vld [vmem:[#allocation5 + $0x4f0] sm:$0xff]
        %v526 = vld [vmem:[#allocation5 + $0x4f8] sm:$0xff]
        %v527 = vld [vmem:[#allocation5 + $0x500] sm:$0xff]
        %v528 = vld [vmem:[#allocation5 + $0x508] sm:$0xff]
        %v529 = vld [vmem:[#allocation5 + $0x510] sm:$0xff]
        %v530 = vld [vmem:[#allocation5 + $0x518] sm:$0xff]
        %v531 = vld [vmem:[#allocation5 + $0x520] sm:$0xff]
        %v532 = vld [vmem:[#allocation5 + $0x528] sm:$0xff]
        %v533 = vld [vmem:[#allocation5 + $0x530] sm:$0xff]
        %v534 = vld [vmem:[#allocation5 + $0x538] sm:$0xff]
        %v535 = vld [vmem:[#allocation5 + $0x540] sm:$0xff]
        %v536 = vld [vmem:[#allocation5 + $0x548] sm:$0xff]
        %v537 = vld [vmem:[#allocation5 + $0x550] sm:$0xff]
        %v538 = vld [vmem:[#allocation5 + $0x558] sm:$0xff]
        %v539 = vld [vmem:[#allocation5 + $0x560] sm:$0xff]
        %v540 = vld [vmem:[#allocation5 + $0x568] sm:$0xff]
        %v541 = vld [vmem:[#allocation5 + $0x570] sm:$0xff]
        %v542 = vld [vmem:[#allocation5 + $0x578] sm:$0xff]
        %v543 = vld [vmem:[#allocation5 + $0x580] sm:$0xff]
        %v544 = vld [vmem:[#allocation5 + $0x588] sm:$0xff]
        %v545 = vld [vmem:[#allocation5 + $0x590] sm:$0xff]
        %v546 = vld [vmem:[#allocation5 + $0x598] sm:$0xff]
        %v547 = vld [vmem:[#allocation5 + $0x5a0] sm:$0xff]
        %v548 = vld [vmem:[#allocation5 + $0x5a8] sm:$0xff]
        %v549 = vld [vmem:[#allocation5 + $0x5b0] sm:$0xff]
        %v550 = vld [vmem:[#allocation5 + $0x5b8] sm:$0xff]
        %v551 = vld [vmem:[#allocation5 + $0x5c0] sm:$0xff]
        %v552 = vld [vmem:[#allocation5 + $0x5c8] sm:$0xff]
        %v553 = vld [vmem:[#allocation5 + $0x5d0] sm:$0xff]
        %v554 = vld [vmem:[#allocation5 + $0x5d8] sm:$0xff]
        %v555 = vld [vmem:[#allocation5 + $0x5e0] sm:$0xff]
        %v556 = vld [vmem:[#allocation5 + $0x5e8] sm:$0xff]
        %v557 = vld [vmem:[#allocation5 + $0x5f0] sm:$0xff]
        %v558 = vld [vmem:[#allocation5 + $0x5f8] sm:$0xff]
        %v559 = vld [vmem:[%s3] sm:$0x3f]
        %v561 = vlaneseq
        %v562 = vshrl.u32 %v561, 7
        %v563 = vsub.s32 0, %v562
        %v564 = vrot.slane %v559, %v563
        %v565 = vlaneseq
        %v566 = vshrl.u32 %v565, 7
        %v567 = vsub.s32 1, %v566
        %v568 = vrot.slane %v559, %v567
        %v569 = vlaneseq
        %v570 = vshrl.u32 %v569, 7
        %v571 = vsub.s32 2, %v570
        %v572 = vrot.slane %v559, %v571
        %v573 = vlaneseq
        %v574 = vshrl.u32 %v573, 7
        %v575 = vsub.s32 3, %v574
        %v576 = vrot.slane %v559, %v575
        %v577 = vlaneseq
        %v578 = vshrl.u32 %v577, 7
        %v579 = vsub.s32 4, %v578
        %v580 = vrot.slane %v559, %v579
        %v581 = vlaneseq
        %v582 = vshrl.u32 %v581, 7
        %v583 = vsub.s32 5, %v582
        %v584 = vrot.slane %v559, %v583
        %591 = vmatprep.subr.mxu0 %v368
        %592 = vmatpush1.msra.mxu0 %v367
        %593 = vmatprep.subr.mxu0 %v374
        %594 = vmatpush1.msra.mxu0 %v373
        %595 = vmatprep.subr.mxu0 %v380
        %596 = vmatpush1.msra.mxu0 %v379
        %597 = vmatprep.subr.mxu0 %v386
        %598 = vmatpush1.msra.mxu0 %v385
        %599 = vmatprep.subr.mxu0 %v392
        %600 = vmatpush1.msra.mxu0 %v391
        %601 = vmatprep.subr.mxu0 %v398
        %602 = vmatpush1.msra.mxu0 %v397
        %603 = vmatprep.subr.mxu0 %v404
        %604 = vmatpush1.msra.mxu0 %v403
        %605 = vmatprep.subr.mxu0 %v410
        %606 = vmatpush1.msra.mxu0 %v409
        %607 = vmatprep.subr.mxu0 %v416
        %608 = vmatpush1.msra.mxu0 %v415
        %609 = vmatprep.subr.mxu0 %v422
        %610 = vmatpush1.msra.mxu0 %v421
        %611 = vmatprep.subr.mxu0 %v428
        %612 = vmatpush1.msra.mxu0 %v427
        %613 = vmatprep.subr.mxu0 %v434
        %614 = vmatpush1.msra.mxu0 %v433
        %615 = vmatprep.subr.mxu0 %v440
        %616 = vmatpush1.msra.mxu0 %v439
        %617 = vmatprep.subr.mxu0 %v446
        %618 = vmatpush1.msra.mxu0 %v445
        %619 = vmatprep.subr.mxu0 %v452
        %620 = vmatpush1.msra.mxu0 %v451
        %621 = vmatprep.subr.mxu0 %v458
        %622 = vmatpush1.msra.mxu0 %v457
        %623 = vmatprep.subr.mxu0 %v464
        %624 = vmatpush1.msra.mxu0 %v463
        %625 = vmatprep.subr.mxu0 %v470
        %626 = vmatpush1.msra.mxu0 %v469
        %627 = vmatprep.subr.mxu0 %v476
        %628 = vmatpush1.msra.mxu0 %v475
        %629 = vmatprep.subr.mxu0 %v482
        %630 = vmatpush1.msra.mxu0 %v481
        %631 = vmatprep.subr.mxu0 %v488
        %632 = vmatpush1.msra.mxu0 %v487
        %633 = vmatprep.subr.mxu0 %v494
        %634 = vmatpush1.msra.mxu0 %v493
        %635 = vmatprep.subr.mxu0 %v500
        %636 = vmatpush1.msra.mxu0 %v499
        %637 = vmatprep.subr.mxu0 %v506
        %638 = vmatpush1.msra.mxu0 %v505
        %639 = vmatprep.subr.mxu0 %v512
        %640 = vmatpush1.msra.mxu0 %v511
        %641 = vmatprep.subr.mxu0 %v518
        %642 = vmatpush1.msra.mxu0 %v517
        %643 = vmatprep.subr.mxu0 %v524
        %644 = vmatpush1.msra.mxu0 %v523
        %645 = vmatprep.subr.mxu0 %v530
        %646 = vmatpush1.msra.mxu0 %v529
        %647 = vmatprep.subr.mxu0 %v536
        %648 = vmatpush1.msra.mxu0 %v535
        %649 = vmatprep.subr.mxu0 %v542
        %650 = vmatpush1.msra.mxu0 %v541
        %651 = vmatprep.subr.mxu0 %v548
        %652 = vmatpush1.msra.mxu0 %v547
        %653 = vmatprep.subr.mxu0 %v554
        %654 = vmatpush1.msra.mxu0 %v553
        %655 = vmatprep.mubr.f32.mxu0 %v366
        %656 = vmatmul.mubr.f32.gmra.mrb[0].mxu0 %v365
        %v657 = vpop.f32.mrb[0].mxu0
        %v658 = vadd.f32 %v564, %v657
        %v659 = vpop.f32.mrb[0].mxu0
        %v660 = vadd.f32 %v568, %v659
        %661 = vdwg.mxu0
        %662 = vmatprep.subr.mxu0 %v370
        %663 = vmatpush1.msra.mxu0 %v369
        %664 = vmatprep.subr.mxu0 %v376
        %665 = vmatpush1.msra.mxu0 %v375
        %666 = vmatprep.subr.mxu0 %v382
        %667 = vmatpush1.msra.mxu0 %v381
        %668 = vmatprep.subr.mxu0 %v388
        %669 = vmatpush1.msra.mxu0 %v387
        %670 = vmatprep.subr.mxu0 %v394
        %671 = vmatpush1.msra.mxu0 %v393
        %672 = vmatprep.subr.mxu0 %v400
        %673 = vmatpush1.msra.mxu0 %v399
        %674 = vmatprep.subr.mxu0 %v406
        %675 = vmatpush1.msra.mxu0 %v405
        %676 = vmatprep.subr.mxu0 %v412
        %677 = vmatpush1.msra.mxu0 %v411
        %678 = vmatprep.subr.mxu0 %v418
        %679 = vmatpush1.msra.mxu0 %v417
        %680 = vmatprep.subr.mxu0 %v424
        %681 = vmatpush1.msra.mxu0 %v423
        %682 = vmatprep.subr.mxu0 %v430
        %683 = vmatpush1.msra.mxu0 %v429
        %684 = vmatprep.subr.mxu0 %v436
        %685 = vmatpush1.msra.mxu0 %v435
        %686 = vmatprep.subr.mxu0 %v442
        %687 = vmatpush1.msra.mxu0 %v441
        %688 = vmatprep.subr.mxu0 %v448
        %689 = vmatpush1.msra.mxu0 %v447
        %690 = vmatprep.subr.mxu0 %v454
        %691 = vmatpush1.msra.mxu0 %v453
        %692 = vmatprep.subr.mxu0 %v460
        %693 = vmatpush1.msra.mxu0 %v459
        %694 = vmatprep.subr.mxu0 %v466
        %695 = vmatpush1.msra.mxu0 %v465
        %696 = vmatprep.subr.mxu0 %v472
        %697 = vmatpush1.msra.mxu0 %v471
        %698 = vmatprep.subr.mxu0 %v478
        %699 = vmatpush1.msra.mxu0 %v477
        %700 = vmatprep.subr.mxu0 %v484
        %701 = vmatpush1.msra.mxu0 %v483
        %702 = vmatprep.subr.mxu0 %v490
        %703 = vmatpush1.msra.mxu0 %v489
        %704 = vmatprep.subr.mxu0 %v496
        %705 = vmatpush1.msra.mxu0 %v495
        %706 = vmatprep.subr.mxu0 %v502
        %707 = vmatpush1.msra.mxu0 %v501
        %708 = vmatprep.subr.mxu0 %v508
        %709 = vmatpush1.msra.mxu0 %v507
        %710 = vmatprep.subr.mxu0 %v514
        %711 = vmatpush1.msra.mxu0 %v513
        %712 = vmatprep.subr.mxu0 %v520
        %713 = vmatpush1.msra.mxu0 %v519
        %714 = vmatprep.subr.mxu0 %v526
        %715 = vmatpush1.msra.mxu0 %v525
        %716 = vmatprep.subr.mxu0 %v532
        %717 = vmatpush1.msra.mxu0 %v531
        %718 = vmatprep.subr.mxu0 %v538
        %719 = vmatpush1.msra.mxu0 %v537
        %720 = vmatprep.subr.mxu0 %v544
        %721 = vmatpush1.msra.mxu0 %v543
        %722 = vmatprep.subr.mxu0 %v550
        %723 = vmatpush1.msra.mxu0 %v549
        %724 = vmatprep.subr.mxu0 %v556
        %725 = vmatpush1.msra.mxu0 %v555
        %726 = vmatprep.mubr.f32.mxu0 %v366
        %727 = vmatmul.mubr.f32.gmra.mrb[0].mxu0 %v365
        %v728 = vpop.f32.mrb[0].mxu0
        %v729 = vadd.f32 %v572, %v728
        %v730 = vpop.f32.mrb[0].mxu0
        %v731 = vadd.f32 %v576, %v730
        %732 = vdwg.mxu0
        %733 = vmatprep.subr.mxu0 %v372
        %734 = vmatpush1.msra.mxu0 %v371
        %735 = vmatprep.subr.mxu0 %v378
        %736 = vmatpush1.msra.mxu0 %v377
        %737 = vmatprep.subr.mxu0 %v384
        %738 = vmatpush1.msra.mxu0 %v383
        %739 = vmatprep.subr.mxu0 %v390
        %740 = vmatpush1.msra.mxu0 %v389
        %741 = vmatprep.subr.mxu0 %v396
        %742 = vmatpush1.msra.mxu0 %v395
        %743 = vmatprep.subr.mxu0 %v402
        %744 = vmatpush1.msra.mxu0 %v401
        %745 = vmatprep.subr.mxu0 %v408
        %746 = vmatpush1.msra.mxu0 %v407
        %747 = vmatprep.subr.mxu0 %v414
        %748 = vmatpush1.msra.mxu0 %v413
        %749 = vmatprep.subr.mxu0 %v420
        %750 = vmatpush1.msra.mxu0 %v419
        %751 = vmatprep.subr.mxu0 %v426
        %752 = vmatpush1.msra.mxu0 %v425
        %753 = vmatprep.subr.mxu0 %v432
        %754 = vmatpush1.msra.mxu0 %v431
        %755 = vmatprep.subr.mxu0 %v438
        %756 = vmatpush1.msra.mxu0 %v437
        %757 = vmatprep.subr.mxu0 %v444
        %758 = vmatpush1.msra.mxu0 %v443
        %759 = vmatprep.subr.mxu0 %v450
        %760 = vmatpush1.msra.mxu0 %v449
        %761 = vmatprep.subr.mxu0 %v456
        %762 = vmatpush1.msra.mxu0 %v455
        %763 = vmatprep.subr.mxu0 %v462
        %764 = vmatpush1.msra.mxu0 %v461
        %765 = vmatprep.subr.mxu0 %v468
        %766 = vmatpush1.msra.mxu0 %v467
        %767 = vmatprep.subr.mxu0 %v474
        %768 = vmatpush1.msra.mxu0 %v473
        %769 = vmatprep.subr.mxu0 %v480
        %770 = vmatpush1.msra.mxu0 %v479
        %771 = vmatprep.subr.mxu0 %v486
        %772 = vmatpush1.msra.mxu0 %v485
        %773 = vmatprep.subr.mxu0 %v492
        %774 = vmatpush1.msra.mxu0 %v491
        %775 = vmatprep.subr.mxu0 %v498
        %776 = vmatpush1.msra.mxu0 %v497
        %777 = vmatprep.subr.mxu0 %v504
        %778 = vmatpush1.msra.mxu0 %v503
        %779 = vmatprep.subr.mxu0 %v510
        %780 = vmatpush1.msra.mxu0 %v509
        %781 = vmatprep.subr.mxu0 %v516
        %782 = vmatpush1.msra.mxu0 %v515
        %783 = vmatprep.subr.mxu0 %v522
        %784 = vmatpush1.msra.mxu0 %v521
        %785 = vmatprep.subr.mxu0 %v528
        %786 = vmatpush1.msra.mxu0 %v527
        %787 = vmatprep.subr.mxu0 %v534
        %788 = vmatpush1.msra.mxu0 %v533
        %789 = vmatprep.subr.mxu0 %v540
        %790 = vmatpush1.msra.mxu0 %v539
        %791 = vmatprep.subr.mxu0 %v546
        %792 = vmatpush1.msra.mxu0 %v545
        %793 = vmatprep.subr.mxu0 %v552
        %794 = vmatpush1.msra.mxu0 %v551
        %795 = vmatprep.subr.mxu0 %v558
        %796 = vmatpush1.msra.mxu0 %v557
        %797 = vmatprep.mubr.f32.mxu0 %v366
        %798 = vmatmul.mubr.f32.gmra.mrb[0].mxu0 %v365
        %v799 = vpop.f32.mrb[0].mxu0
        %v800 = vadd.f32 %v580, %v799
        %v801 = vpop.f32.mrb[0].mxu0
        %v802 = vadd.f32 %v584, %v801
        %803 = vdwg.mxu0
        %v804 = vld [vmem:[%s364] sm:$0x1]
        %vm805 = vcmask 523264
        %v807 = vsel %vm805, %v658, 0
        %v810 = vsel %vm805, %v729, 0
        %812 = vmatprep.subr.mxu0 0.0
        %813 = vmatpush1.xpose.msra.mxu0 %v810
        %814 = vmatprep.subr.mxu0 0.0
        %815 = vmatpush1.xpose.msra.mxu0 0.0
        %816 = vmatprep.subr.mxu0 0.0
        %817 = vmatpush1.xpose.msra.mxu0 0.0
        %818 = vmatprep.subr.mxu0 0.0
        %819 = vmatpush1.xpose.msra.mxu0 0.0
        %820 = vmatprep.subr.mxu0 0.0
        %821 = vmatpush1.xpose.msra.mxu0 0.0
        %822 = vmatprep.subr.mxu0 0.0
        %823 = vmatpush1.xpose.msra.mxu0 0.0
        %824 = vmatprep.subr.mxu0 0.0
        %825 = vmatpush1.xpose.msra.mxu0 0.0
        %826 = vmatprep.subr.mxu0 0.0
        %827 = vmatpush1.xpose.msra.mxu0 0.0
        %828 = vmatprep.subr.mxu0 0.0
        %829 = vmatpush1.xpose.msra.mxu0 0.0
        %830 = vmatprep.subr.mxu0 0.0
        %831 = vmatpush1.xpose.msra.mxu0 0.0
        %832 = vmatprep.subr.mxu0 0.0
        %833 = vmatpush1.xpose.msra.mxu0 0.0
        %834 = vmatprep.subr.mxu0 0.0
        %835 = vmatpush1.xpose.msra.mxu0 0.0
        %836 = vmatprep.subr.mxu0 0.0
        %837 = vmatpush1.xpose.msra.mxu0 0.0
        %838 = vmatprep.subr.mxu0 0.0
        %839 = vmatpush1.xpose.msra.mxu0 0.0
        %840 = vmatprep.subr.mxu0 0.0
        %841 = vmatpush1.xpose.msra.mxu0 0.0
        %842 = vmatprep.subr.mxu0 0.0
        %843 = vmatpush1.xpose.msra.mxu0 0.0
        %844 = vmatprep.subr.mxu0 0.0
        %845 = vmatpush1.xpose.msra.mxu0 0.0
        %846 = vmatprep.subr.mxu0 0.0
        %847 = vmatpush1.xpose.msra.mxu0 0.0
        %848 = vmatprep.subr.mxu0 0.0
        %849 = vmatpush1.xpose.msra.mxu0 0.0
        %850 = vmatprep.subr.mxu0 0.0
        %851 = vmatpush1.xpose.msra.mxu0 0.0
        %852 = vmatprep.subr.mxu0 0.0
        %853 = vmatpush1.xpose.msra.mxu0 0.0
        %854 = vmatprep.subr.mxu0 0.0
        %855 = vmatpush1.xpose.msra.mxu0 0.0
        %856 = vmatprep.subr.mxu0 0.0
        %857 = vmatpush1.xpose.msra.mxu0 0.0
        %858 = vmatprep.subr.mxu0 0.0
        %859 = vmatpush1.xpose.msra.mxu0 0.0
        %860 = vmatprep.subr.mxu0 0.0
        %861 = vmatpush1.xpose.msra.mxu0 0.0
        %862 = vmatprep.subr.mxu0 0.0
        %863 = vmatpush1.xpose.msra.mxu0 0.0
        %864 = vmatprep.subr.mxu0 0.0
        %865 = vmatpush1.xpose.msra.mxu0 0.0
        %866 = vmatprep.subr.mxu0 0.0
        %867 = vmatpush1.xpose.msra.mxu0 0.0
        %868 = vmatprep.subr.mxu0 0.0
        %869 = vmatpush1.xpose.msra.mxu0 0.0
        %870 = vmatprep.subr.mxu0 0.0
        %871 = vmatpush1.xpose.msra.mxu0 0.0
        %872 = vmatprep.subr.mxu0 0.0
        %873 = vmatpush1.xpose.msra.mxu0 0.0
        %874 = vmatprep.subr.mxu0 0.0
        %875 = vmatpush1.xpose.msra.mxu0 0.0
        %876 = vmatprep.mubr.f32.mxu0 0.0
        %877 = vmatmul.mubr.f32.gmra.mrb[0].mxu0 %v807
        %v878 = vpop.f32.mrb[0].mxu0
        %v879 = vadd.f32 0.0, %v878
        %v880 = vpop.f32.mrb[0].mxu0
        %881 = vdwg.mxu0
        %v882 = vmul.f32 %v879, 0.125
        %v884 = vlaneseq
        %v885 = vshrl.u32 %v884, 7
        %v886 = vsub.s32 0, %v885
        %v887 = vrot.slane %v804, %v886
        %v889 = vadd.f32 %v882, %v887
        %vm890 = vcmask 64512
        %v891 = vsel %vm890, %v889, -inf
        %892 = vmax.xlane.f32.xlu0 %v891
        %v893 = vpop.xlane.xlu0 %892
        %v894 = vsub.f32 %v889, %v893
        %v895 = vmul.f32 %v894, 1.442695
        %v896 = vpow.pop %v895
        %v897 = vsel %vm890, %v896, 0.0
        %898 = vadd.xlane.f32.xlu0 %v897
        %v899 = vpop.xlane.xlu0 %898
        %v900 = vrcp.pop %v899
        %v901 = vmul.f32 %v896, %v900
        %v903 = vsel %vm890, %v901, 0
        %905 = vmatprep.subr.mxu0 0.0
        %906 = vmatpush1.msra.mxu0 %v800
        %907 = vmatprep.subr.mxu0 0.0
        %908 = vmatpush1.msra.mxu0 0.0
        %909 = vmatprep.subr.mxu0 0.0
        %910 = vmatpush1.msra.mxu0 0.0
        %911 = vmatprep.subr.mxu0 0.0
        %912 = vmatpush1.msra.mxu0 0.0
        %913 = vmatprep.subr.mxu0 0.0
        %914 = vmatpush1.msra.mxu0 0.0
        %915 = vmatprep.subr.mxu0 0.0
        %916 = vmatpush1.msra.mxu0 0.0
        %917 = vmatprep.subr.mxu0 0.0
        %918 = vmatpush1.msra.mxu0 0.0
        %919 = vmatprep.subr.mxu0 0.0
        %920 = vmatpush1.msra.mxu0 0.0
        %921 = vmatprep.subr.mxu0 0.0
        %922 = vmatpush1.msra.mxu0 0.0
        %923 = vmatprep.subr.mxu0 0.0
        %924 = vmatpush1.msra.mxu0 0.0
        %925 = vmatprep.subr.mxu0 0.0
        %926 = vmatpush1.msra.mxu0 0.0
        %927 = vmatprep.subr.mxu0 0.0
        %928 = vmatpush1.msra.mxu0 0.0
        %929 = vmatprep.subr.mxu0 0.0
        %930 = vmatpush1.msra.mxu0 0.0
        %931 = vmatprep.subr.mxu0 0.0
        %932 = vmatpush1.msra.mxu0 0.0
        %933 = vmatprep.subr.mxu0 0.0
        %934 = vmatpush1.msra.mxu0 0.0
        %935 = vmatprep.subr.mxu0 0.0
        %936 = vmatpush1.msra.mxu0 0.0
        %937 = vmatprep.subr.mxu0 0.0
        %938 = vmatpush1.msra.mxu0 0.0
        %939 = vmatprep.subr.mxu0 0.0
        %940 = vmatpush1.msra.mxu0 0.0
        %941 = vmatprep.subr.mxu0 0.0
        %942 = vmatpush1.msra.mxu0 0.0
        %943 = vmatprep.subr.mxu0 0.0
        %944 = vmatpush1.msra.mxu0 0.0
        %945 = vmatprep.subr.mxu0 0.0
        %946 = vmatpush1.msra.mxu0 0.0
        %947 = vmatprep.subr.mxu0 0.0
        %948 = vmatpush1.msra.mxu0 0.0
        %949 = vmatprep.subr.mxu0 0.0
        %950 = vmatpush1.msra.mxu0 0.0
        %951 = vmatprep.subr.mxu0 0.0
        %952 = vmatpush1.msra.mxu0 0.0
        %953 = vmatprep.subr.mxu0 0.0
        %954 = vmatpush1.msra.mxu0 0.0
        %955 = vmatprep.subr.mxu0 0.0
        %956 = vmatpush1.msra.mxu0 0.0
        %957 = vmatprep.subr.mxu0 0.0
        %958 = vmatpush1.msra.mxu0 0.0
        %959 = vmatprep.subr.mxu0 0.0
        %960 = vmatpush1.msra.mxu0 0.0
        %961 = vmatprep.subr.mxu0 0.0
        %962 = vmatpush1.msra.mxu0 0.0
        %963 = vmatprep.subr.mxu0 0.0
        %964 = vmatpush1.msra.mxu0 0.0
        %965 = vmatprep.subr.mxu0 0.0
        %966 = vmatpush1.msra.mxu0 0.0
        %967 = vmatprep.subr.mxu0 0.0
        %968 = vmatpush1.msra.mxu0 0.0
        %969 = vmatprep.mubr.f32.mxu0 0.0
        %970 = vmatmul.mubr.f32.gmra.mrb[0].mxu0 %v903
        %v971 = vpop.f32.mrb[0].mxu0
        %v972 = vadd.f32 0.0, %v971
        %v973 = vpop.f32.mrb[0].mxu0
        %974 = vdwg.mxu0
        %975 = vrot.lane.b32.xlu0 %v658, 64
        %v976 = vpop.permute.xlu0 %975
        %977 = vrot.lane.b32.xlu0 %v729, 64
        %v978 = vpop.permute.xlu0 %977
        %v979 = vsel %vm805, %v976, 0
        %v981 = vsel %vm805, %v978, 0
        %983 = vmatprep.subr.mxu0 0.0
        %984 = vmatpush1.xpose.msra.mxu0 %v981
        %985 = vmatprep.subr.mxu0 0.0
        %986 = vmatpush1.xpose.msra.mxu0 0.0
        %987 = vmatprep.subr.mxu0 0.0
        %988 = vmatpush1.xpose.msra.mxu0 0.0
        %989 = vmatprep.subr.mxu0 0.0
        %990 = vmatpush1.xpose.msra.mxu0 0.0
        %991 = vmatprep.subr.mxu0 0.0
        %992 = vmatpush1.xpose.msra.mxu0 0.0
        %993 = vmatprep.subr.mxu0 0.0
        %994 = vmatpush1.xpose.msra.mxu0 0.0
        %995 = vmatprep.subr.mxu0 0.0
        %996 = vmatpush1.xpose.msra.mxu0 0.0
        %997 = vmatprep.subr.mxu0 0.0
        %998 = vmatpush1.xpose.msra.mxu0 0.0
        %999 = vmatprep.subr.mxu0 0.0
        %1000 = vmatpush1.xpose.msra.mxu0 0.0
        %1001 = vmatprep.subr.mxu0 0.0
        %1002 = vmatpush1.xpose.msra.mxu0 0.0
        %1003 = vmatprep.subr.mxu0 0.0
        %1004 = vmatpush1.xpose.msra.mxu0 0.0
        %1005 = vmatprep.subr.mxu0 0.0
        %1006 = vmatpush1.xpose.msra.mxu0 0.0
        %1007 = vmatprep.subr.mxu0 0.0
        %1008 = vmatpush1.xpose.msra.mxu0 0.0
        %1009 = vmatprep.subr.mxu0 0.0
        %1010 = vmatpush1.xpose.msra.mxu0 0.0
        %1011 = vmatprep.subr.mxu0 0.0
        %1012 = vmatpush1.xpose.msra.mxu0 0.0
        %1013 = vmatprep.subr.mxu0 0.0
        %1014 = vmatpush1.xpose.msra.mxu0 0.0
        %1015 = vmatprep.subr.mxu0 0.0
        %1016 = vmatpush1.xpose.msra.mxu0 0.0
        %1017 = vmatprep.subr.mxu0 0.0
        %1018 = vmatpush1.xpose.msra.mxu0 0.0
        %1019 = vmatprep.subr.mxu0 0.0
        %1020 = vmatpush1.xpose.msra.mxu0 0.0
        %1021 = vmatprep.subr.mxu0 0.0
        %1022 = vmatpush1.xpose.msra.mxu0 0.0
        %1023 = vmatprep.subr.mxu0 0.0
        %1024 = vmatpush1.xpose.msra.mxu0 0.0
        %1025 = vmatprep.subr.mxu0 0.0
        %1026 = vmatpush1.xpose.msra.mxu0 0.0
        %1027 = vmatprep.subr.mxu0 0.0
        %1028 = vmatpush1.xpose.msra.mxu0 0.0
        %1029 = vmatprep.subr.mxu0 0.0
        %1030 = vmatpush1.xpose.msra.mxu0 0.0
        %1031 = vmatprep.subr.mxu0 0.0
        %1032 = vmatpush1.xpose.msra.mxu0 0.0
        %1033 = vmatprep.subr.mxu0 0.0
        %1034 = vmatpush1.xpose.msra.mxu0 0.0
        %1035 = vmatprep.subr.mxu0 0.0
        %1036 = vmatpush1.xpose.msra.mxu0 0.0
        %1037 = vmatprep.subr.mxu0 0.0
        %1038 = vmatpush1.xpose.msra.mxu0 0.0
        %1039 = vmatprep.subr.mxu0 0.0
        %1040 = vmatpush1.xpose.msra.mxu0 0.0
        %1041 = vmatprep.subr.mxu0 0.0
        %1042 = vmatpush1.xpose.msra.mxu0 0.0
        %1043 = vmatprep.subr.mxu0 0.0
        %1044 = vmatpush1.xpose.msra.mxu0 0.0
        %1045 = vmatprep.subr.mxu0 0.0
        %1046 = vmatpush1.xpose.msra.mxu0 0.0
        %1047 = vmatprep.mubr.f32.mxu0 0.0
        %1048 = vmatmul.mubr.f32.gmra.mrb[0].mxu0 %v979
        %v1049 = vpop.f32.mrb[0].mxu0
        %v1050 = vadd.f32 0.0, %v1049
        %v1051 = vpop.f32.mrb[0].mxu0
        %1052 = vdwg.mxu0
        %v1053 = vmul.f32 %v1050, 0.125
        %v1054 = vadd.f32 %v1053, %v887
        %v1055 = vsel %vm890, %v1054, -inf
        %1056 = vmax.xlane.f32.xlu0 %v1055
        %v1057 = vpop.xlane.xlu0 %1056
        %v1058 = vsub.f32 %v1054, %v1057
        %v1059 = vmul.f32 %v1058, 1.442695
        %v1060 = vpow.pop %v1059
        %v1061 = vsel %vm890, %v1060, 0.0
        %1062 = vadd.xlane.f32.xlu0 %v1061
        %v1063 = vpop.xlane.xlu0 %1062
        %v1064 = vrcp.pop %v1063
        %v1065 = vmul.f32 %v1060, %v1064
        %1067 = vrot.lane.b32.xlu0 %v800, 64
        %v1068 = vpop.permute.xlu0 %1067
        %v1071 = vsel %vm890, %v1065, 0
        %1073 = vmatprep.subr.mxu0 0.0
        %1074 = vmatpush1.msra.mxu0 %v1068
        %1075 = vmatprep.subr.mxu0 0.0
        %1076 = vmatpush1.msra.mxu0 0.0
        %1077 = vmatprep.subr.mxu0 0.0
        %1078 = vmatpush1.msra.mxu0 0.0
        %1079 = vmatprep.subr.mxu0 0.0
        %1080 = vmatpush1.msra.mxu0 0.0
        %1081 = vmatprep.subr.mxu0 0.0
        %1082 = vmatpush1.msra.mxu0 0.0
        %1083 = vmatprep.subr.mxu0 0.0
        %1084 = vmatpush1.msra.mxu0 0.0
        %1085 = vmatprep.subr.mxu0 0.0
        %1086 = vmatpush1.msra.mxu0 0.0
        %1087 = vmatprep.subr.mxu0 0.0
        %1088 = vmatpush1.msra.mxu0 0.0
        %1089 = vmatprep.subr.mxu0 0.0
        %1090 = vmatpush1.msra.mxu0 0.0
        %1091 = vmatprep.subr.mxu0 0.0
        %1092 = vmatpush1.msra.mxu0 0.0
        %1093 = vmatprep.subr.mxu0 0.0
        %1094 = vmatpush1.msra.mxu0 0.0
        %1095 = vmatprep.subr.mxu0 0.0
        %1096 = vmatpush1.msra.mxu0 0.0
        %1097 = vmatprep.subr.mxu0 0.0
        %1098 = vmatpush1.msra.mxu0 0.0
        %1099 = vmatprep.subr.mxu0 0.0
        %1100 = vmatpush1.msra.mxu0 0.0
        %1101 = vmatprep.subr.mxu0 0.0
        %1102 = vmatpush1.msra.mxu0 0.0
        %1103 = vmatprep.subr.mxu0 0.0
        %1104 = vmatpush1.msra.mxu0 0.0
        %1105 = vmatprep.subr.mxu0 0.0
        %1106 = vmatpush1.msra.mxu0 0.0
        %1107 = vmatprep.subr.mxu0 0.0
        %1108 = vmatpush1.msra.mxu0 0.0
        %1109 = vmatprep.subr.mxu0 0.0
        %1110 = vmatpush1.msra.mxu0 0.0
        %1111 = vmatprep.subr.mxu0 0.0
        %1112 = vmatpush1.msra.mxu0 0.0
        %1113 = vmatprep.subr.mxu0 0.0
        %1114 = vmatpush1.msra.mxu0 0.0
        %1115 = vmatprep.subr.mxu0 0.0
        %1116 = vmatpush1.msra.mxu0 0.0
        %1117 = vmatprep.subr.mxu0 0.0
        %1118 = vmatpush1.msra.mxu0 0.0
        %1119 = vmatprep.subr.mxu0 0.0
        %1120 = vmatpush1.msra.mxu0 0.0
        %1121 = vmatprep.subr.mxu0 0.0
        %1122 = vmatpush1.msra.mxu0 0.0
        %1123 = vmatprep.subr.mxu0 0.0
        %1124 = vmatpush1.msra.mxu0 0.0
        %1125 = vmatprep.subr.mxu0 0.0
        %1126 = vmatpush1.msra.mxu0 0.0
        %1127 = vmatprep.subr.mxu0 0.0
        %1128 = vmatpush1.msra.mxu0 0.0
        %1129 = vmatprep.subr.mxu0 0.0
        %1130 = vmatpush1.msra.mxu0 0.0
        %1131 = vmatprep.subr.mxu0 0.0
        %1132 = vmatpush1.msra.mxu0 0.0
        %1133 = vmatprep.subr.mxu0 0.0
        %1134 = vmatpush1.msra.mxu0 0.0
        %1135 = vmatprep.subr.mxu0 0.0
        %1136 = vmatpush1.msra.mxu0 0.0
        %1137 = vmatprep.mubr.f32.mxu0 0.0
        %1138 = vmatmul.mubr.f32.gmra.mrb[0].mxu0 %v1071
        %v1139 = vpop.f32.mrb[0].mxu0
        %v1140 = vadd.f32 0.0, %v1139
        %v1141 = vpop.f32.mrb[0].mxu0
        %1142 = vdwg.mxu0
        %v1144 = vsel %vm805, %v660, 0
        %v1147 = vsel %vm805, %v731, 0
        %1149 = vmatprep.subr.mxu0 0.0
        %1150 = vmatpush1.xpose.msra.mxu0 %v1147
        %1151 = vmatprep.subr.mxu0 0.0
        %1152 = vmatpush1.xpose.msra.mxu0 0.0
        %1153 = vmatprep.subr.mxu0 0.0
        %1154 = vmatpush1.xpose.msra.mxu0 0.0
        %1155 = vmatprep.subr.mxu0 0.0
        %1156 = vmatpush1.xpose.msra.mxu0 0.0
        %1157 = vmatprep.subr.mxu0 0.0
        %1158 = vmatpush1.xpose.msra.mxu0 0.0
        %1159 = vmatprep.subr.mxu0 0.0
        %1160 = vmatpush1.xpose.msra.mxu0 0.0
        %1161 = vmatprep.subr.mxu0 0.0
        %1162 = vmatpush1.xpose.msra.mxu0 0.0
        %1163 = vmatprep.subr.mxu0 0.0
        %1164 = vmatpush1.xpose.msra.mxu0 0.0
        %1165 = vmatprep.subr.mxu0 0.0
        %1166 = vmatpush1.xpose.msra.mxu0 0.0
        %1167 = vmatprep.subr.mxu0 0.0
        %1168 = vmatpush1.xpose.msra.mxu0 0.0
        %1169 = vmatprep.subr.mxu0 0.0
        %1170 = vmatpush1.xpose.msra.mxu0 0.0
        %1171 = vmatprep.subr.mxu0 0.0
        %1172 = vmatpush1.xpose.msra.mxu0 0.0
        %1173 = vmatprep.subr.mxu0 0.0
        %1174 = vmatpush1.xpose.msra.mxu0 0.0
        %1175 = vmatprep.subr.mxu0 0.0
        %1176 = vmatpush1.xpose.msra.mxu0 0.0
        %1177 = vmatprep.subr.mxu0 0.0
        %1178 = vmatpush1.xpose.msra.mxu0 0.0
        %1179 = vmatprep.subr.mxu0 0.0
        %1180 = vmatpush1.xpose.msra.mxu0 0.0
        %1181 = vmatprep.subr.mxu0 0.0
        %1182 = vmatpush1.xpose.msra.mxu0 0.0
        %1183 = vmatprep.subr.mxu0 0.0
        %1184 = vmatpush1.xpose.msra.mxu0 0.0
        %1185 = vmatprep.subr.mxu0 0.0
        %1186 = vmatpush1.xpose.msra.mxu0 0.0
        %1187 = vmatprep.subr.mxu0 0.0
        %1188 = vmatpush1.xpose.msra.mxu0 0.0
        %1189 = vmatprep.subr.mxu0 0.0
        %1190 = vmatpush1.xpose.msra.mxu0 0.0
        %1191 = vmatprep.subr.mxu0 0.0
        %1192 = vmatpush1.xpose.msra.mxu0 0.0
        %1193 = vmatprep.subr.mxu0 0.0
        %1194 = vmatpush1.xpose.msra.mxu0 0.0
        %1195 = vmatprep.subr.mxu0 0.0
        %1196 = vmatpush1.xpose.msra.mxu0 0.0
        %1197 = vmatprep.subr.mxu0 0.0
        %1198 = vmatpush1.xpose.msra.mxu0 0.0
        %1199 = vmatprep.subr.mxu0 0.0
        %1200 = vmatpush1.xpose.msra.mxu0 0.0
        %1201 = vmatprep.subr.mxu0 0.0
        %1202 = vmatpush1.xpose.msra.mxu0 0.0
        %1203 = vmatprep.subr.mxu0 0.0
        %1204 = vmatpush1.xpose.msra.mxu0 0.0
        %1205 = vmatprep.subr.mxu0 0.0
        %1206 = vmatpush1.xpose.msra.mxu0 0.0
        %1207 = vmatprep.subr.mxu0 0.0
        %1208 = vmatpush1.xpose.msra.mxu0 0.0
        %1209 = vmatprep.subr.mxu0 0.0
        %1210 = vmatpush1.xpose.msra.mxu0 0.0
        %1211 = vmatprep.subr.mxu0 0.0
        %1212 = vmatpush1.xpose.msra.mxu0 0.0
        %1213 = vmatprep.mubr.f32.mxu0 0.0
        %1214 = vmatmul.mubr.f32.gmra.mrb[0].mxu0 %v1144
        %v1215 = vpop.f32.mrb[0].mxu0
        %v1216 = vadd.f32 0.0, %v1215
        %v1217 = vpop.f32.mrb[0].mxu0
        %1218 = vdwg.mxu0
        %v1219 = vmul.f32 %v1216, 0.125
        %v1220 = vadd.f32 %v1219, %v887
        %v1221 = vsel %vm890, %v1220, -inf
        %1222 = vmax.xlane.f32.xlu0 %v1221
        %v1223 = vpop.xlane.xlu0 %1222
        %v1224 = vsub.f32 %v1220, %v1223
        %v1225 = vmul.f32 %v1224, 1.442695
        %v1226 = vpow.pop %v1225
        %v1227 = vsel %vm890, %v1226, 0.0
        %1228 = vadd.xlane.f32.xlu0 %v1227
        %v1229 = vpop.xlane.xlu0 %1228
        %v1230 = vrcp.pop %v1229
        %v1231 = vmul.f32 %v1226, %v1230
        %v1233 = vsel %vm890, %v1231, 0
        %1235 = vmatprep.subr.mxu0 0.0
        %1236 = vmatpush1.msra.mxu0 %v802
        %1237 = vmatprep.subr.mxu0 0.0
        %1238 = vmatpush1.msra.mxu0 0.0
        %1239 = vmatprep.subr.mxu0 0.0
        %1240 = vmatpush1.msra.mxu0 0.0
        %1241 = vmatprep.subr.mxu0 0.0
        %1242 = vmatpush1.msra.mxu0 0.0
        %1243 = vmatprep.subr.mxu0 0.0
        %1244 = vmatpush1.msra.mxu0 0.0
        %1245 = vmatprep.subr.mxu0 0.0
        %1246 = vmatpush1.msra.mxu0 0.0
        %1247 = vmatprep.subr.mxu0 0.0
        %1248 = vmatpush1.msra.mxu0 0.0
        %1249 = vmatprep.subr.mxu0 0.0
        %1250 = vmatpush1.msra.mxu0 0.0
        %1251 = vmatprep.subr.mxu0 0.0
        %1252 = vmatpush1.msra.mxu0 0.0
        %1253 = vmatprep.subr.mxu0 0.0
        %1254 = vmatpush1.msra.mxu0 0.0
        %1255 = vmatprep.subr.mxu0 0.0
        %1256 = vmatpush1.msra.mxu0 0.0
        %1257 = vmatprep.subr.mxu0 0.0
        %1258 = vmatpush1.msra.mxu0 0.0
        %1259 = vmatprep.subr.mxu0 0.0
        %1260 = vmatpush1.msra.mxu0 0.0
        %1261 = vmatprep.subr.mxu0 0.0
        %1262 = vmatpush1.msra.mxu0 0.0
        %1263 = vmatprep.subr.mxu0 0.0
        %1264 = vmatpush1.msra.mxu0 0.0
        %1265 = vmatprep.subr.mxu0 0.0
        %1266 = vmatpush1.msra.mxu0 0.0
        %1267 = vmatprep.subr.mxu0 0.0
        %1268 = vmatpush1.msra.mxu0 0.0
        %1269 = vmatprep.subr.mxu0 0.0
        %1270 = vmatpush1.msra.mxu0 0.0
        %1271 = vmatprep.subr.mxu0 0.0
        %1272 = vmatpush1.msra.mxu0 0.0
        %1273 = vmatprep.subr.mxu0 0.0
        %1274 = vmatpush1.msra.mxu0 0.0
        %1275 = vmatprep.subr.mxu0 0.0
        %1276 = vmatpush1.msra.mxu0 0.0
        %1277 = vmatprep.subr.mxu0 0.0
        %1278 = vmatpush1.msra.mxu0 0.0
        %1279 = vmatprep.subr.mxu0 0.0
        %1280 = vmatpush1.msra.mxu0 0.0
        %1281 = vmatprep.subr.mxu0 0.0
        %1282 = vmatpush1.msra.mxu0 0.0
        %1283 = vmatprep.subr.mxu0 0.0
        %1284 = vmatpush1.msra.mxu0 0.0
        %1285 = vmatprep.subr.mxu0 0.0
        %1286 = vmatpush1.msra.mxu0 0.0
        %1287 = vmatprep.subr.mxu0 0.0
        %1288 = vmatpush1.msra.mxu0 0.0
        %1289 = vmatprep.subr.mxu0 0.0
        %1290 = vmatpush1.msra.mxu0 0.0
        %1291 = vmatprep.subr.mxu0 0.0
        %1292 = vmatpush1.msra.mxu0 0.0
        %1293 = vmatprep.subr.mxu0 0.0
        %1294 = vmatpush1.msra.mxu0 0.0
        %1295 = vmatprep.subr.mxu0 0.0
        %1296 = vmatpush1.msra.mxu0 0.0
        %1297 = vmatprep.subr.mxu0 0.0
        %1298 = vmatpush1.msra.mxu0 0.0
        %1299 = vmatprep.mubr.f32.mxu0 0.0
        %1300 = vmatmul.mubr.f32.gmra.mrb[0].mxu0 %v1233
        %v1301 = vpop.f32.mrb[0].mxu0
        %v1302 = vadd.f32 0.0, %v1301
        %v1303 = vpop.f32.mrb[0].mxu0
        %1304 = vdwg.mxu0
        %1305 = vrot.lane.b32.xlu0 %v660, 64
        %v1306 = vpop.permute.xlu0 %1305
        %1307 = vrot.lane.b32.xlu0 %v731, 64
        %v1308 = vpop.permute.xlu0 %1307
        %v1309 = vsel %vm805, %v1306, 0
        %v1311 = vsel %vm805, %v1308, 0
        %1313 = vmatprep.subr.mxu0 0.0
        %1314 = vmatpush1.xpose.msra.mxu0 %v1311
        %1315 = vmatprep.subr.mxu0 0.0
        %1316 = vmatpush1.xpose.msra.mxu0 0.0
        %1317 = vmatprep.subr.mxu0 0.0
        %1318 = vmatpush1.xpose.msra.mxu0 0.0
        %1319 = vmatprep.subr.mxu0 0.0
        %1320 = vmatpush1.xpose.msra.mxu0 0.0
        %1321 = vmatprep.subr.mxu0 0.0
        %1322 = vmatpush1.xpose.msra.mxu0 0.0
        %1323 = vmatprep.subr.mxu0 0.0
        %1324 = vmatpush1.xpose.msra.mxu0 0.0
        %1325 = vmatprep.subr.mxu0 0.0
        %1326 = vmatpush1.xpose.msra.mxu0 0.0
        %1327 = vmatprep.subr.mxu0 0.0
        %1328 = vmatpush1.xpose.msra.mxu0 0.0
        %1329 = vmatprep.subr.mxu0 0.0
        %1330 = vmatpush1.xpose.msra.mxu0 0.0
        %1331 = vmatprep.subr.mxu0 0.0
        %1332 = vmatpush1.xpose.msra.mxu0 0.0
        %1333 = vmatprep.subr.mxu0 0.0
        %1334 = vmatpush1.xpose.msra.mxu0 0.0
        %1335 = vmatprep.subr.mxu0 0.0
        %1336 = vmatpush1.xpose.msra.mxu0 0.0
        %1337 = vmatprep.subr.mxu0 0.0
        %1338 = vmatpush1.xpose.msra.mxu0 0.0
        %1339 = vmatprep.subr.mxu0 0.0
        %1340 = vmatpush1.xpose.msra.mxu0 0.0
        %1341 = vmatprep.subr.mxu0 0.0
        %1342 = vmatpush1.xpose.msra.mxu0 0.0
        %1343 = vmatprep.subr.mxu0 0.0
        %1344 = vmatpush1.xpose.msra.mxu0 0.0
        %1345 = vmatprep.subr.mxu0 0.0
        %1346 = vmatpush1.xpose.msra.mxu0 0.0
        %1347 = vmatprep.subr.mxu0 0.0
        %1348 = vmatpush1.xpose.msra.mxu0 0.0
        %1349 = vmatprep.subr.mxu0 0.0
        %1350 = vmatpush1.xpose.msra.mxu0 0.0
        %1351 = vmatprep.subr.mxu0 0.0
        %1352 = vmatpush1.xpose.msra.mxu0 0.0
        %1353 = vmatprep.subr.mxu0 0.0
        %1354 = vmatpush1.xpose.msra.mxu0 0.0
        %1355 = vmatprep.subr.mxu0 0.0
        %1356 = vmatpush1.xpose.msra.mxu0 0.0
        %1357 = vmatprep.subr.mxu0 0.0
        %1358 = vmatpush1.xpose.msra.mxu0 0.0
        %1359 = vmatprep.subr.mxu0 0.0
        %1360 = vmatpush1.xpose.msra.mxu0 0.0
        %1361 = vmatprep.subr.mxu0 0.0
        %1362 = vmatpush1.xpose.msra.mxu0 0.0
        %1363 = vmatprep.subr.mxu0 0.0
        %1364 = vmatpush1.xpose.msra.mxu0 0.0
        %1365 = vmatprep.subr.mxu0 0.0
        %1366 = vmatpush1.xpose.msra.mxu0 0.0
        %1367 = vmatprep.subr.mxu0 0.0
        %1368 = vmatpush1.xpose.msra.mxu0 0.0
        %1369 = vmatprep.subr.mxu0 0.0
        %1370 = vmatpush1.xpose.msra.mxu0 0.0
        %1371 = vmatprep.subr.mxu0 0.0
        %1372 = vmatpush1.xpose.msra.mxu0 0.0
        %1373 = vmatprep.subr.mxu0 0.0
        %1374 = vmatpush1.xpose.msra.mxu0 0.0
        %1375 = vmatprep.subr.mxu0 0.0
        %1376 = vmatpush1.xpose.msra.mxu0 0.0
        %1377 = vmatprep.mubr.f32.mxu0 0.0
        %1378 = vmatmul.mubr.f32.gmra.mrb[0].mxu0 %v1309
        %v1379 = vpop.f32.mrb[0].mxu0
        %v1380 = vadd.f32 0.0, %v1379
        %v1381 = vpop.f32.mrb[0].mxu0
        %1382 = vdwg.mxu0
        %v1383 = vmul.f32 %v1380, 0.125
        %v1384 = vadd.f32 %v1383, %v887
        %v1385 = vsel %vm890, %v1384, -inf
        %1386 = vmax.xlane.f32.xlu0 %v1385
        %v1387 = vpop.xlane.xlu0 %1386
        %v1388 = vsub.f32 %v1384, %v1387
        %v1389 = vmul.f32 %v1388, 1.442695
        %v1390 = vpow.pop %v1389
        %v1391 = vsel %vm890, %v1390, 0.0
        %1392 = vadd.xlane.f32.xlu0 %v1391
        %v1393 = vpop.xlane.xlu0 %1392
        %v1394 = vrcp.pop %v1393
        %v1395 = vmul.f32 %v1390, %v1394
        %1397 = vrot.lane.b32.xlu0 %v802, 64
        %v1398 = vpop.permute.xlu0 %1397
        %v1401 = vsel %vm890, %v1395, 0
        %1403 = vmatprep.subr.mxu0 0.0
        %1404 = vmatpush1.msra.mxu0 %v1398
        %1405 = vmatprep.subr.mxu0 0.0
        %1406 = vmatpush1.msra.mxu0 0.0
        %1407 = vmatprep.subr.mxu0 0.0
        %1408 = vmatpush1.msra.mxu0 0.0
        %1409 = vmatprep.subr.mxu0 0.0
        %1410 = vmatpush1.msra.mxu0 0.0
        %1411 = vmatprep.subr.mxu0 0.0
        %1412 = vmatpush1.msra.mxu0 0.0
        %1413 = vmatprep.subr.mxu0 0.0
        %1414 = vmatpush1.msra.mxu0 0.0
        %1415 = vmatprep.subr.mxu0 0.0
        %1416 = vmatpush1.msra.mxu0 0.0
        %1417 = vmatprep.subr.mxu0 0.0
        %1418 = vmatpush1.msra.mxu0 0.0
        %1419 = vmatprep.subr.mxu0 0.0
        %1420 = vmatpush1.msra.mxu0 0.0
        %1421 = vmatprep.subr.mxu0 0.0
        %1422 = vmatpush1.msra.mxu0 0.0
        %1423 = vmatprep.subr.mxu0 0.0
        %1424 = vmatpush1.msra.mxu0 0.0
        %1425 = vmatprep.subr.mxu0 0.0
        %1426 = vmatpush1.msra.mxu0 0.0
        %1427 = vmatprep.subr.mxu0 0.0
        %1428 = vmatpush1.msra.mxu0 0.0
        %1429 = vmatprep.subr.mxu0 0.0
        %1430 = vmatpush1.msra.mxu0 0.0
        %1431 = vmatprep.subr.mxu0 0.0
        %1432 = vmatpush1.msra.mxu0 0.0
        %1433 = vmatprep.subr.mxu0 0.0
        %1434 = vmatpush1.msra.mxu0 0.0
        %1435 = vmatprep.subr.mxu0 0.0
        %1436 = vmatpush1.msra.mxu0 0.0
        %1437 = vmatprep.subr.mxu0 0.0
        %1438 = vmatpush1.msra.mxu0 0.0
        %1439 = vmatprep.subr.mxu0 0.0
        %1440 = vmatpush1.msra.mxu0 0.0
        %1441 = vmatprep.subr.mxu0 0.0
        %1442 = vmatpush1.msra.mxu0 0.0
        %1443 = vmatprep.subr.mxu0 0.0
        %1444 = vmatpush1.msra.mxu0 0.0
        %1445 = vmatprep.subr.mxu0 0.0
        %1446 = vmatpush1.msra.mxu0 0.0
        %1447 = vmatprep.subr.mxu0 0.0
        %1448 = vmatpush1.msra.mxu0 0.0
        %1449 = vmatprep.subr.mxu0 0.0
        %1450 = vmatpush1.msra.mxu0 0.0
        %1451 = vmatprep.subr.mxu0 0.0
        %1452 = vmatpush1.msra.mxu0 0.0
        %1453 = vmatprep.subr.mxu0 0.0
        %1454 = vmatpush1.msra.mxu0 0.0
        %1455 = vmatprep.subr.mxu0 0.0
        %1456 = vmatpush1.msra.mxu0 0.0
        %1457 = vmatprep.subr.mxu0 0.0
        %1458 = vmatpush1.msra.mxu0 0.0
        %1459 = vmatprep.subr.mxu0 0.0
        %1460 = vmatpush1.msra.mxu0 0.0
        %1461 = vmatprep.subr.mxu0 0.0
        %1462 = vmatpush1.msra.mxu0 0.0
        %1463 = vmatprep.subr.mxu0 0.0
        %1464 = vmatpush1.msra.mxu0 0.0
        %1465 = vmatprep.subr.mxu0 0.0
        %1466 = vmatpush1.msra.mxu0 0.0
        %1467 = vmatprep.mubr.f32.mxu0 0.0
        %1468 = vmatmul.mubr.f32.gmra.mrb[0].mxu0 %v1401
        %v1469 = vpop.f32.mrb[0].mxu0
        %v1470 = vadd.f32 0.0, %v1469
        %v1471 = vpop.f32.mrb[0].mxu0
        %1472 = vdwg.mxu0
        %1474 = vrot.lane.b32.xlu0 %v1140, 64
        %v1475 = vpop.permute.xlu0 %1474
        %1478 = vrot.lane.b32.xlu0 %v1470, 64
        %v1479 = vpop.permute.xlu0 %1478
        %v1481 = vsel %vm805, %v972, %v1475
        %v1482 = vsel %vm805, %v1302, %v1479
        %v1483 = vld [vmem:[#allocation7] sm:$0xff]
        %v1484 = vld [vmem:[#allocation7 + $0x8] sm:$0xff]
        %v1485 = vld [vmem:[#allocation7 + $0x10] sm:$0xff]
        %v1486 = vld [vmem:[#allocation7 + $0x18] sm:$0xff]
        %v1487 = vld [vmem:[#allocation7 + $0x20] sm:$0xff]
        %v1488 = vld [vmem:[#allocation7 + $0x28] sm:$0xff]
        %v1489 = vld [vmem:[#allocation7 + $0x30] sm:$0xff]
        %v1490 = vld [vmem:[#allocation7 + $0x38] sm:$0xff]
        %v1491 = vld [vmem:[#allocation7 + $0x40] sm:$0xff]
        %v1492 = vld [vmem:[#allocation7 + $0x48] sm:$0xff]
        %v1493 = vld [vmem:[#allocation7 + $0x50] sm:$0xff]
        %v1494 = vld [vmem:[#allocation7 + $0x58] sm:$0xff]
        %v1495 = vld [vmem:[#allocation7 + $0x60] sm:$0xff]
        %v1496 = vld [vmem:[#allocation7 + $0x68] sm:$0xff]
        %v1497 = vld [vmem:[#allocation7 + $0x70] sm:$0xff]
        %v1498 = vld [vmem:[#allocation7 + $0x78] sm:$0xff]
        %v1499 = vld [vmem:[#allocation7 + $0x80] sm:$0xff]
        %v1500 = vld [vmem:[#allocation7 + $0x88] sm:$0xff]
        %v1501 = vld [vmem:[#allocation7 + $0x90] sm:$0xff]
        %v1502 = vld [vmem:[#allocation7 + $0x98] sm:$0xff]
        %v1503 = vld [vmem:[#allocation7 + $0xa0] sm:$0xff]
        %v1504 = vld [vmem:[#allocation7 + $0xa8] sm:$0xff]
        %v1505 = vld [vmem:[#allocation7 + $0xb0] sm:$0xff]
        %v1506 = vld [vmem:[#allocation7 + $0xb8] sm:$0xff]
        %v1507 = vld [vmem:[#allocation7 + $0xc0] sm:$0xff]
        %v1508 = vld [vmem:[#allocation7 + $0xc8] sm:$0xff]
        %v1509 = vld [vmem:[#allocation7 + $0xd0] sm:$0xff]
        %v1510 = vld [vmem:[#allocation7 + $0xd8] sm:$0xff]
        %v1511 = vld [vmem:[#allocation7 + $0xe0] sm:$0xff]
        %v1512 = vld [vmem:[#allocation7 + $0xe8] sm:$0xff]
        %v1513 = vld [vmem:[#allocation7 + $0xf0] sm:$0xff]
        %v1514 = vld [vmem:[#allocation7 + $0xf8] sm:$0xff]
        %v1515 = vld [vmem:[#allocation7 + $0x100] sm:$0xff]
        %v1516 = vld [vmem:[#allocation7 + $0x108] sm:$0xff]
        %v1517 = vld [vmem:[#allocation7 + $0x110] sm:$0xff]
        %v1518 = vld [vmem:[#allocation7 + $0x118] sm:$0xff]
        %v1519 = vld [vmem:[#allocation7 + $0x120] sm:$0xff]
        %v1520 = vld [vmem:[#allocation7 + $0x128] sm:$0xff]
        %v1521 = vld [vmem:[#allocation7 + $0x130] sm:$0xff]
        %v1522 = vld [vmem:[#allocation7 + $0x138] sm:$0xff]
        %v1523 = vld [vmem:[#allocation7 + $0x140] sm:$0xff]
        %v1524 = vld [vmem:[#allocation7 + $0x148] sm:$0xff]
        %v1525 = vld [vmem:[#allocation7 + $0x150] sm:$0xff]
        %v1526 = vld [vmem:[#allocation7 + $0x158] sm:$0xff]
        %v1527 = vld [vmem:[#allocation7 + $0x160] sm:$0xff]
        %v1528 = vld [vmem:[#allocation7 + $0x168] sm:$0xff]
        %v1529 = vld [vmem:[#allocation7 + $0x170] sm:$0xff]
        %v1530 = vld [vmem:[#allocation7 + $0x178] sm:$0xff]
        %v1531 = vld [vmem:[#allocation7 + $0x180] sm:$0xff]
        %v1532 = vld [vmem:[#allocation7 + $0x188] sm:$0xff]
        %v1533 = vld [vmem:[#allocation7 + $0x190] sm:$0xff]
        %v1534 = vld [vmem:[#allocation7 + $0x198] sm:$0xff]
        %v1535 = vld [vmem:[#allocation7 + $0x1a0] sm:$0xff]
        %v1536 = vld [vmem:[#allocation7 + $0x1a8] sm:$0xff]
        %v1537 = vld [vmem:[#allocation7 + $0x1b0] sm:$0xff]
        %v1538 = vld [vmem:[#allocation7 + $0x1b8] sm:$0xff]
        %v1539 = vld [vmem:[#allocation7 + $0x1c0] sm:$0xff]
        %v1540 = vld [vmem:[#allocation7 + $0x1c8] sm:$0xff]
        %v1541 = vld [vmem:[#allocation7 + $0x1d0] sm:$0xff]
        %v1542 = vld [vmem:[#allocation7 + $0x1d8] sm:$0xff]
        %v1543 = vld [vmem:[#allocation7 + $0x1e0] sm:$0xff]
        %v1544 = vld [vmem:[#allocation7 + $0x1e8] sm:$0xff]
        %v1545 = vld [vmem:[#allocation7 + $0x1f0] sm:$0xff]
        %v1546 = vld [vmem:[#allocation7 + $0x1f8] sm:$0xff]
        %v1547 = vld [vmem:[%s5] sm:$0x3]
        %v1549 = vlaneseq
        %v1550 = vshrl.u32 %v1549, 7
        %v1551 = vsub.s32 0, %v1550
        %v1552 = vrot.slane %v1547, %v1551
        %v1553 = vlaneseq
        %v1554 = vshrl.u32 %v1553, 7
        %v1555 = vsub.s32 1, %v1554
        %v1556 = vrot.slane %v1547, %v1555
        %1559 = vmatprep.subr.mxu0 %v1484
        %1560 = vmatpush1.msra.mxu0 %v1483
        %1561 = vmatprep.subr.mxu0 %v1486
        %1562 = vmatpush1.msra.mxu0 %v1485
        %1563 = vmatprep.subr.mxu0 %v1488
        %1564 = vmatpush1.msra.mxu0 %v1487
        %1565 = vmatprep.subr.mxu0 %v1490
        %1566 = vmatpush1.msra.mxu0 %v1489
        %1567 = vmatprep.subr.mxu0 %v1492
        %1568 = vmatpush1.msra.mxu0 %v1491
        %1569 = vmatprep.subr.mxu0 %v1494
        %1570 = vmatpush1.msra.mxu0 %v1493
        %1571 = vmatprep.subr.mxu0 %v1496
        %1572 = vmatpush1.msra.mxu0 %v1495
        %1573 = vmatprep.subr.mxu0 %v1498
        %1574 = vmatpush1.msra.mxu0 %v1497
        %1575 = vmatprep.subr.mxu0 %v1500
        %1576 = vmatpush1.msra.mxu0 %v1499
        %1577 = vmatprep.subr.mxu0 %v1502
        %1578 = vmatpush1.msra.mxu0 %v1501
        %1579 = vmatprep.subr.mxu0 %v1504
        %1580 = vmatpush1.msra.mxu0 %v1503
        %1581 = vmatprep.subr.mxu0 %v1506
        %1582 = vmatpush1.msra.mxu0 %v1505
        %1583 = vmatprep.subr.mxu0 %v1508
        %1584 = vmatpush1.msra.mxu0 %v1507
        %1585 = vmatprep.subr.mxu0 %v1510
        %1586 = vmatpush1.msra.mxu0 %v1509
        %1587 = vmatprep.subr.mxu0 %v1512
        %1588 = vmatpush1.msra.mxu0 %v1511
        %1589 = vmatprep.subr.mxu0 %v1514
        %1590 = vmatpush1.msra.mxu0 %v1513
        %1591 = vmatprep.subr.mxu0 %v1516
        %1592 = vmatpush1.msra.mxu0 %v1515
        %1593 = vmatprep.subr.mxu0 %v1518
        %1594 = vmatpush1.msra.mxu0 %v1517
        %1595 = vmatprep.subr.mxu0 %v1520
        %1596 = vmatpush1.msra.mxu0 %v1519
        %1597 = vmatprep.subr.mxu0 %v1522
        %1598 = vmatpush1.msra.mxu0 %v1521
        %1599 = vmatprep.subr.mxu0 %v1524
        %1600 = vmatpush1.msra.mxu0 %v1523
        %1601 = vmatprep.subr.mxu0 %v1526
        %1602 = vmatpush1.msra.mxu0 %v1525
        %1603 = vmatprep.subr.mxu0 %v1528
        %1604 = vmatpush1.msra.mxu0 %v1527
        %1605 = vmatprep.subr.mxu0 %v1530
        %1606 = vmatpush1.msra.mxu0 %v1529
        %1607 = vmatprep.subr.mxu0 %v1532
        %1608 = vmatpush1.msra.mxu0 %v1531
        %1609 = vmatprep.subr.mxu0 %v1534
        %1610 = vmatpush1.msra.mxu0 %v1533
        %1611 = vmatprep.subr.mxu0 %v1536
        %1612 = vmatpush1.msra.mxu0 %v1535
        %1613 = vmatprep.subr.mxu0 %v1538
        %1614 = vmatpush1.msra.mxu0 %v1537
        %1615 = vmatprep.subr.mxu0 %v1540
        %1616 = vmatpush1.msra.mxu0 %v1539
        %1617 = vmatprep.subr.mxu0 %v1542
        %1618 = vmatpush1.msra.mxu0 %v1541
        %1619 = vmatprep.subr.mxu0 %v1544
        %1620 = vmatpush1.msra.mxu0 %v1543
        %1621 = vmatprep.subr.mxu0 %v1546
        %1622 = vmatpush1.msra.mxu0 %v1545
        %1623 = vmatprep.mubr.f32.mxu0 %v1482
        %1624 = vmatmul.mubr.f32.gmra.mrb[0].mxu0 %v1481
        %v1625 = vpop.f32.mrb[0].mxu0
        %v1626 = vadd.f32 %v1552, %v1625
        %v1627 = vpop.f32.mrb[0].mxu0
        %v1628 = vadd.f32 %v1556, %v1627
        %1629 = vdwg.mxu0
        %v1630 = vadd.f32 %v1626, %v365
        %v1631 = vadd.f32 %v1628, %v366
        %v1632 = vld [vmem:[%s6] sm:$0x3]
        %v1633 = vld [vmem:[%s7] sm:$0x3]
        %v1634 = vadd.f32 %v1630, %v1631
        %1635 = vadd.xlane.f32.xlu0 %v1634
        %v1636 = vpop.xlane.xlu0 %1635
        %v1637 = vmul.f32 %v1636, 0.00390625
        %v1638 = vsub.f32 %v1630, %v1637
        %v1639 = vsub.f32 %v1631, %v1637
        %v1640 = vmul.f32 %v1638, %v1638
        %v1641 = vmul.f32 %v1639, %v1639
        %v1642 = vadd.f32 %v1640, %v1641
        %1643 = vadd.xlane.f32.xlu0 %v1642
        %v1644 = vpop.xlane.xlu0 %1643
        %v1645 = vmul.f32 %v1644, 0.00390625
        %v1646 = vadd.f32 %v1645, 1e-12
        %v1647 = vrsqrt.pop %v1646
        %v1648 = vmul.f32 %v1638, %v1647
        %v1649 = vmul.f32 %v1639, %v1647
        %v1651 = vlaneseq
        %v1652 = vshrl.u32 %v1651, 7
        %v1653 = vsub.s32 0, %v1652
        %v1654 = vrot.slane %v1632, %v1653
        %v1655 = vlaneseq
        %v1656 = vshrl.u32 %v1655, 7
        %v1657 = vsub.s32 1, %v1656
        %v1658 = vrot.slane %v1632, %v1657
        %v1661 = vmul.f32 %v1654, %v1648
        %v1662 = vmul.f32 %v1658, %v1649
        %v1664 = vlaneseq
        %v1665 = vshrl.u32 %v1664, 7
        %v1666 = vsub.s32 0, %v1665
        %v1667 = vrot.slane %v1633, %v1666
        %v1668 = vlaneseq
        %v1669 = vshrl.u32 %v1668, 7
        %v1670 = vsub.s32 1, %v1669
        %v1671 = vrot.slane %v1633, %v1670
        %v1674 = vadd.f32 %v1661, %v1667
        %v1675 = vadd.f32 %v1662, %v1671
        %1676 = vst [vmem:[%s361] sm:$0xff] %v1674
        %1677 = vst [vmem:[%s361 + $0x8] sm:$0xff] %v1675
        %s1678 = sand.u32 %s212, 1
        %s1679 = scalar_lea.sflag [#allocation4], %s1678
        %s1680 = sand.u32 %s212, 1
        %s1681 = smul.addr %s1680, 16
        %s1682 = scalar_lea.vmem [#allocation8], %s1681
        // Predicated region
        $region65: #{tpu_custom_call.1} parent=51 // pred_check
          %p1683 = pneg %p222
        $region66: #{tpu_custom_call.1} parent=51 // pred_check_branch
          %1685 = sbr.rel (%p1683) target = $region68
        $region67: #{tpu_custom_call.1} parent=51 // pred_region
          %s1687 = ssub.s32 256, 256
          %1688 = vsyncadd %s1679, %s1687
          %s1689 = smul.addr %s26, 2
          %s1690 = smul.addr %s1689, 128
          %s1691 = scalar_lea.hbm %s8, %s1690
          %s1693 = sshll.u32 %s1682, 4
          %s1694 = int_to_ptr.vmem [resolvable:$true] %s1693
          %1696 = dma.vmem_to_hbm [thread:$0]  %s1694, 256, %s1691, %s1679
        $region68: #{tpu_custom_call.1} parent=51 // pred_fallthru
          _
      $region52: #{tpu_custom_call.1} parent=5 // pred_fallthru
        _
      %p1697 = scmp.le.s32.totalorder 2, %s21
      // Predicated region
      $region69: #{tpu_custom_call.1} parent=5 // pred_check
        %p1698 = pneg %p1697
      $region70: #{tpu_custom_call.1} parent=5 // pred_check_branch
        %1700 = sbr.rel (%p1698) target = $region72
      $region71: #{tpu_custom_call.1} parent=5 // pred_region
        %s1701 = ssub.s32 %s21, 2
        // Predicated region
        $region73: #{tpu_custom_call.1} parent=71 // pred_check
          %p1702 = pneg %p228
        $region74: #{tpu_custom_call.1} parent=71 // pred_check_branch
          %1704 = sbr.rel (%p1702) target = $region76
        $region75: #{tpu_custom_call.1} parent=71 // pred_region
          %s1705 = sand.u32 %s213, 1
          %s1706 = scalar_lea.sflag [#allocation4], %s1705
          %s1707 = sand.u32 %s213, 1
          %s1708 = smul.addr %s1707, 16
          %s1709 = scalar_lea.vmem [#allocation8], %s1708
          %1710 = dma.done %s1706, 256
        $region76: #{tpu_custom_call.1} parent=71 // pred_fallthru
          _
      $region72: #{tpu_custom_call.1} parent=5 // pred_fallthru
        _
    $region6: #{tpu_custom_call.1} parent=1 // loop_footer
      %s25 = sadd.s32 1, %s21
    $region7: #{tpu_custom_call.1} parent=1 // loop_footer_branch
      %20 = sbr.rel target = $region3
    $region8: #{tpu_custom_call.1} parent=1 // loop_exit
      _
    %1711 = vsyncpa [#allocation3], 1
    %s1712 = scalar_lea.sflag [#allocation3], 1
    %1713 = vsyncpa %s1712, 1
    %1714 = vsyncpa [#allocation6], 1
    %1715 = vsyncpa [#allocation4], 1
    %s1716 = scalar_lea.sflag [#allocation4], 1
    %1717 = vsyncpa %s1716, 1

</llo_original>
